<compile_context>
chip_gen: v6e
topology: v6e:2x2x1
jax: 0.10.0
libtpu: 0.0.40
codegen_flags: <defaults>
</compile_context>

<pallas_src>
import functools

import jax
import jax.numpy as jnp
from jax.experimental import pallas as pl
from jax.experimental.pallas import tpu as pltpu

NEG_INF = float(-2.0 ** 32 + 1)   # matches paddings = ones * (-2**32 + 1)
LN_EPS = 1e-8


def _layer_norm_val(x, gamma, beta):
    mu = jnp.mean(x, axis=-1, keepdims=True)
    var = jnp.mean((x - mu) ** 2, axis=-1, keepdims=True)
    return (x - mu) * jax.lax.rsqrt(var + LN_EPS) * gamma + beta


# ----------------------------------------------------------------------------
# Fused transformer-block kernel (one batch item per grid step)
# ----------------------------------------------------------------------------
def _block_kernel(seqs_ref, g1_ref, b1_ref, wqkv_ref, bqkv_ref,
                  posk_ref, posv_ref, embk_ref, embv_ref,
                  tmat_ref, padq_ref, g2_ref, b2_ref,
                  w1_ref, bb1_ref, w2_ref, bb2_ref,
                  o_ref, mha_ref, *, num_heads, head_dim, t1_chunk):
    x = seqs_ref[0]                                   # (L, H) f32
    L, H = x.shape

    # ---- attention LayerNorm + fused QKV projection (bf16 MXU, f32 acc) ----
    ln1 = _layer_norm_val(x, g1_ref[...], b1_ref[...])
    w = wqkv_ref[...]                                 # (H, 3H) bf16
    bias = bqkv_ref[...]                              # (1, 3H) f32
    ln1_16 = ln1.astype(jnp.bfloat16)
    x16 = x.astype(jnp.bfloat16)
    q = jnp.dot(ln1_16, w[:, :H], preferred_element_type=jnp.float32) + bias[:, :H]
    k = jnp.dot(x16, w[:, H:2 * H], preferred_element_type=jnp.float32) + bias[:, H:2 * H]
    v = jnp.dot(x16, w[:, 2 * H:], preferred_element_type=jnp.float32) + bias[:, 2 * H:]
    k = k + posk_ref[0]                               # fold abs_pos_K into K
    v = v + posv_ref[0]                               # fold abs_pos_V into V

    # ---- masks: causal (strictly upper) OR padded query row ----
    t = tmat_ref[0]                                   # (L, L) int32 time buckets
    padq = padq_ref[0]                                # (L, 1) f32, 1.0 == padded row
    rows = jax.lax.broadcasted_iota(jnp.int32, (L, L), 0)
    cols = jax.lax.broadcasted_iota(jnp.int32, (L, L), 1)
    masked = jnp.logical_or(cols > rows, padq > 0.5)

    # ---- relative-time embedding expansion via chunked one-hot MXU matmuls ----
    # gk[i*L+j, :] = embK[t[i,j], :]  (and gv likewise); built once for all heads,
    # the one-hot chunk is bf16, bounded to t1_chunk lanes, and only feeds the MXU.
    T1p = embk_ref.shape[0]
    gk = jnp.zeros((L * L, H), jnp.float32)
    gv = jnp.zeros((L * L, H), jnp.float32)
    for c in range(T1p // t1_chunk):
        off = c * t1_chunk
        buck = jax.lax.broadcasted_iota(jnp.int32, (L, L, t1_chunk), 2) + off
        oh = (t[:, :, None] == buck).astype(jnp.bfloat16).reshape(L * L, t1_chunk)
        gk = gk + jnp.dot(oh, embk_ref[off:off + t1_chunk, :],
                          preferred_element_type=jnp.float32)
        gv = gv + jnp.dot(oh, embv_ref[off:off + t1_chunk, :],
                          preferred_element_type=jnp.float32)
    gk = gk.reshape(L, L, H)
    gv = gv.reshape(L, L, H)

    # ---- per-head time-aware attention ----
    scale = 1.0 / float(head_dim) ** 0.5
    neg = jnp.float32(NEG_INF)
    q16 = q.astype(jnp.bfloat16)
    k16 = k.astype(jnp.bfloat16)
    v16 = v.astype(jnp.bfloat16)
    dn = (((1,), (1,)), ((), ()))                     # (L,d) x (L,d) -> (L,L)
    for hh in range(num_heads):
        lo = hh * head_dim
        hi = lo + head_dim
        # logits: Q (K+posK)^T  +  sum_d embK[t]_d * Q_d
        logits = jax.lax.dot_general(q16[:, lo:hi], k16[:, lo:hi], dn,
                                     preferred_element_type=jnp.float32)
        logits = logits + jnp.sum(gk[:, :, lo:hi] * q[:, None, lo:hi], axis=-1)
        logits = logits * scale
        logits = jnp.where(masked, neg, logits)

        # softmax over keys (f32, exact divide)
        mx = jnp.max(logits, axis=-1, keepdims=True)
        p = jnp.exp(logits - mx)
        a = p / jnp.sum(p, axis=-1, keepdims=True)

        # output: A (V+posV)  +  sum_j A_ij * embV[t_ij]
        out_h = jnp.dot(a.astype(jnp.bfloat16), v16[:, lo:hi],
                        preferred_element_type=jnp.float32)
        out_h = out_h + jnp.sum(a[:, :, None] * gv[:, :, lo:hi], axis=1)
        mha_ref[:, lo:hi] = out_h                     # per-head write into VMEM scratch

    attn_out = ln1 + mha_ref[...]                     # residual: seqs = Q + MHA

    # ---- forward LayerNorm + PointWiseFeedForward + residual + keep mask ----
    ln2 = _layer_norm_val(attn_out, g2_ref[...], b2_ref[...])
    h1 = jnp.dot(ln2.astype(jnp.bfloat16), w1_ref[...],
                 preferred_element_type=jnp.float32) + bb1_ref[...]
    h1 = jnp.maximum(h1, 0.0)                         # ReLU
    y = jnp.dot(h1.astype(jnp.bfloat16), w2_ref[...],
                preferred_element_type=jnp.float32) + bb2_ref[...] + ln2
    o_ref[0] = y * (1.0 - padq)                       # timeline keep-mask, lane-dense store


def transformer_block_pallas(seqs, blk, posk, posv, embk16, embv16,
                             time_mat, padq, num_heads, t1_chunk):
    B, L, H = seqs.shape
    d = H // num_heads
    T1p = embk16.shape[0]
    g1, b1 = blk['attn_ln']
    g2, b2 = blk['fwd_ln']
    kernel = functools.partial(_block_kernel, num_heads=num_heads,
                               head_dim=d, t1_chunk=t1_chunk)
    per_b3 = lambda b: (b, 0, 0)
    rep2 = lambda b: (0, 0)
    return pl.pallas_call(
        kernel,
        out_shape=jax.ShapeDtypeStruct((B, L, H), jnp.float32),
        grid=(B,),
        in_specs=[
            pl.BlockSpec((1, L, H), per_b3),          # seqs
            pl.BlockSpec((1, H), rep2),               # attn-LN gamma
            pl.BlockSpec((1, H), rep2),               # attn-LN beta
            pl.BlockSpec((H, 3 * H), rep2),           # Wqkv (bf16, resident)
            pl.BlockSpec((1, 3 * H), rep2),           # bqkv
            pl.BlockSpec((1, L, H), per_b3),          # abs_pos_K
            pl.BlockSpec((1, L, H), per_b3),          # abs_pos_V
            pl.BlockSpec((T1p, H), rep2),             # time emb K (bf16, resident)
            pl.BlockSpec((T1p, H), rep2),             # time emb V (bf16, resident)
            pl.BlockSpec((1, L, L), per_b3),          # relative-time buckets (int32)
            pl.BlockSpec((1, L, 1), per_b3),          # padded-query flag
            pl.BlockSpec((1, H), rep2),               # fwd-LN gamma
            pl.BlockSpec((1, H), rep2),               # fwd-LN beta
            pl.BlockSpec((H, H), rep2),               # FFN W1 (bf16)
            pl.BlockSpec((1, H), rep2),               # FFN b1
            pl.BlockSpec((H, H), rep2),               # FFN W2 (bf16)
            pl.BlockSpec((1, H), rep2),               # FFN b2
        ],
        out_specs=pl.BlockSpec((1, L, H), per_b3),
        scratch_shapes=[pltpu.VMEM((L, H), jnp.float32)],
        compiler_params=pltpu.CompilerParams(
            dimension_semantics=("parallel",),
            vmem_limit_bytes=32 * 1024 * 1024),
    )(seqs,
      g1.reshape(1, H), b1.reshape(1, H),
      blk['Wqkv'].astype(jnp.bfloat16), blk['bqkv'].reshape(1, 3 * H),
      posk, posv, embk16, embv16, time_mat, padq,
      g2.reshape(1, H), b2.reshape(1, H),
      blk['W1'].astype(jnp.bfloat16), blk['b1'].reshape(1, H),
      blk['W2'].astype(jnp.bfloat16), blk['b2'].reshape(1, H))


# ----------------------------------------------------------------------------
# Final LayerNorm kernel (row-tiled, rows padded to a multiple of 8)
# ----------------------------------------------------------------------------
def _ln_kernel(x_ref, g_ref, b_ref, o_ref):
    o_ref[...] = _layer_norm_val(x_ref[...], g_ref[...], b_ref[...])


def layer_norm_pallas(x2d, gamma, beta):
    R, H = x2d.shape
    Rp = ((R + 7) // 8) * 8
    xp = x2d if Rp == R else jnp.pad(x2d, ((0, Rp - R), (0, 0)))
    tm = 256
    while Rp % tm:
        tm //= 2
    row = lambda i: (i, 0)
    rep = lambda i: (0, 0)
    out = pl.pallas_call(
        _ln_kernel,
        out_shape=jax.ShapeDtypeStruct((Rp, H), jnp.float32),
        grid=(Rp // tm,),
        in_specs=[pl.BlockSpec((tm, H), row),
                  pl.BlockSpec((1, H), rep),
                  pl.BlockSpec((1, H), rep)],
        out_specs=pl.BlockSpec((tm, H), row),
        compiler_params=pltpu.CompilerParams(dimension_semantics=("parallel",)),
    )(xp, gamma.reshape(1, H), beta.reshape(1, H))
    return out[:R]


# ----------------------------------------------------------------------------
# Parameters & forward pass
# ----------------------------------------------------------------------------
def init_params(key, opt):
    H = opt['hidden_units']
    nb = opt['num_blocks']
    keys = iter(jax.random.split(key, 4 + 6 * nb))

    def nrm(shape, scale=0.02):
        return scale * jax.random.normal(next(keys), shape, jnp.float32)

    abs_pos_K = nrm((opt['maxlen'], H)).at[0].set(0.0)   # padding_idx=0
    abs_pos_V = nrm((opt['maxlen'], H)).at[0].set(0.0)
    params = {
        'abs_pos_K_emb': abs_pos_K,
        'abs_pos_V_emb': abs_pos_V,
        'time_matrix_K_emb': nrm((opt['time_span'] + 1, H)),
        'time_matrix_V_emb': nrm((opt['time_span'] + 1, H)),
        'last_ln': (jnp.ones((H,), jnp.float32), jnp.zeros((H,), jnp.float32)),
        'blocks': [],
    }
    for _ in range(nb):
        params['blocks'].append({
            'attn_ln': (jnp.ones((H,), jnp.float32), jnp.zeros((H,), jnp.float32)),
            'Wqkv': nrm((H, 3 * H)), 'bqkv': nrm((3 * H,)),   # [Q | K | V] stacked
            'fwd_ln': (jnp.ones((H,), jnp.float32), jnp.zeros((H,), jnp.float32)),
            'W1': nrm((H, H)), 'b1': nrm((H,)),
            'W2': nrm((H, H)), 'b2': nrm((H,)),
        })
    return params


def attention_forward(params, seqs_data, seqs, positions, time_matrices, opt):
    H, nh = opt['hidden_units'], opt['num_heads']
    B, L = seqs_data.shape
    assert H % nh == 0

    abs_pos_K = params['abs_pos_K_emb'][positions]            # (B,L,H)
    abs_pos_V = params['abs_pos_V_emb'][positions]

    # pad the time-bucket tables so T1 is chunkable (multiple of 8, or of 128 if large)
    emb_K = params['time_matrix_K_emb']
    emb_V = params['time_matrix_V_emb']
    T1 = emb_K.shape[0]
    if T1 <= 128:
        T1p = ((T1 + 7) // 8) * 8
        t1_chunk = T1p
    else:
        T1p = ((T1 + 127) // 128) * 128
        t1_chunk = 128
    if T1p != T1:
        emb_K = jnp.pad(emb_K, ((0, T1p - T1), (0, 0)))
        emb_V = jnp.pad(emb_V, ((0, T1p - T1), (0, 0)))
    embk16 = emb_K.astype(jnp.bfloat16)
    embv16 = emb_V.astype(jnp.bfloat16)

    time_mat = time_matrices.astype(jnp.int32)                # (B,L,L)
    timeline_mask = (seqs_data == opt['itemnum'] - 1)         # (B,L) bool
    keep = (~timeline_mask).astype(jnp.float32)[..., None]    # (B,L,1)
    padq = timeline_mask.astype(jnp.float32)[..., None]       # (B,L,1)

    seqs = seqs * keep

    for blk in params['blocks']:
        seqs = transformer_block_pallas(seqs, blk, abs_pos_K, abs_pos_V,
                                        embk16, embv16, time_mat, padq,
                                        nh, t1_chunk)

    g3, b3 = params['last_ln']
    return layer_norm_pallas(seqs.reshape(B * L, H), g3, b3).reshape(B, L, H)


# ----------------------------------------------------------------------------
if __name__ == "__main__":
    opt = dict(maxlen=8, hidden_units=32, num_blocks=2, num_heads=2,
               dropout=0.0, time_span=16, itemnum=10, cuda=False)
    B, L, H = 2, opt['maxlen'], opt['hidden_units']

    key = jax.random.PRNGKey(0)
    kp, kd, ks, kt = jax.random.split(key, 4)
    params = init_params(kp, opt)

    seqs_data = jax.random.randint(kd, (B, L), 0, opt['itemnum'])   # some == itemnum-1 -> padding
    seqs = jax.random.normal(ks, (B, L, H), jnp.float32)
    positions = jnp.tile(jnp.arange(L, dtype=jnp.int32)[None, :], (B, 1))
    time_matrices = jax.random.randint(kt, (B, L, L), 0, opt['time_span'] + 1)

    out = attention_forward(params, seqs_data, seqs, positions, time_matrices, opt)
    out = jax.block_until_ready(out)
    assert out.shape == (B, L, H) and out.dtype == jnp.float32
    assert bool(jnp.all(jnp.isfinite(out)))
    print("KERNEL_OK")
</pallas_src>

<mosaic_0001>
module attributes {stable_mosaic.version = 11 : i64} {
  func.func @_block_kernel(%arg0: i32, %arg1: memref<1x8x32xf32, #tpu.memory_space<vmem>>, %arg2: memref<1x32xf32, #tpu.memory_space<vmem>>, %arg3: memref<1x32xf32, #tpu.memory_space<vmem>>, %arg4: memref<32x96xbf16, #tpu.memory_space<vmem>>, %arg5: memref<1x96xf32, #tpu.memory_space<vmem>>, %arg6: memref<1x8x32xf32, #tpu.memory_space<vmem>>, %arg7: memref<1x8x32xf32, #tpu.memory_space<vmem>>, %arg8: memref<24x32xbf16, #tpu.memory_space<vmem>>, %arg9: memref<24x32xbf16, #tpu.memory_space<vmem>>, %arg10: memref<1x8x8xi32, #tpu.memory_space<vmem>>, %arg11: memref<1x8x1xf32, #tpu.memory_space<vmem>>, %arg12: memref<1x32xf32, #tpu.memory_space<vmem>>, %arg13: memref<1x32xf32, #tpu.memory_space<vmem>>, %arg14: memref<32x32xbf16, #tpu.memory_space<vmem>>, %arg15: memref<1x32xf32, #tpu.memory_space<vmem>>, %arg16: memref<32x32xbf16, #tpu.memory_space<vmem>>, %arg17: memref<1x32xf32, #tpu.memory_space<vmem>>, %arg18: memref<1x8x32xf32, #tpu.memory_space<vmem>>, %arg19: memref<8x32xf32, #tpu.memory_space<vmem>>) attributes {dimension_semantics = [#tpu.dimension_semantics<parallel>], iteration_bounds = array<i64: 2>, scalar_prefetch = 0 : i64, scratch_operands = 1 : i64, tpu.core_type = #tpu.core_type<tc>, window_params = [{transform_indices = @transform_0, window_bounds = array<i64: 1, 8, 32>}, {pipeline_mode = #tpu.pipeline_mode<synchronous>, transform_indices = @transform_1, window_bounds = array<i64: 1, 32>}, {pipeline_mode = #tpu.pipeline_mode<synchronous>, transform_indices = @transform_2, window_bounds = array<i64: 1, 32>}, {pipeline_mode = #tpu.pipeline_mode<synchronous>, transform_indices = @transform_3, window_bounds = array<i64: 32, 96>}, {pipeline_mode = #tpu.pipeline_mode<synchronous>, transform_indices = @transform_4, window_bounds = array<i64: 1, 96>}, {transform_indices = @transform_5, window_bounds = array<i64: 1, 8, 32>}, {transform_indices = @transform_6, window_bounds = array<i64: 1, 8, 32>}, {pipeline_mode = #tpu.pipeline_mode<synchronous>, transform_indices = @transform_7, window_bounds = array<i64: 24, 32>}, {pipeline_mode = #tpu.pipeline_mode<synchronous>, transform_indices = @transform_8, window_bounds = array<i64: 24, 32>}, {transform_indices = @transform_9, window_bounds = array<i64: 1, 8, 8>}, {transform_indices = @transform_10, window_bounds = array<i64: 1, 8, 1>}, {pipeline_mode = #tpu.pipeline_mode<synchronous>, transform_indices = @transform_11, window_bounds = array<i64: 1, 32>}, {pipeline_mode = #tpu.pipeline_mode<synchronous>, transform_indices = @transform_12, window_bounds = array<i64: 1, 32>}, {pipeline_mode = #tpu.pipeline_mode<synchronous>, transform_indices = @transform_13, window_bounds = array<i64: 32, 32>}, {pipeline_mode = #tpu.pipeline_mode<synchronous>, transform_indices = @transform_14, window_bounds = array<i64: 1, 32>}, {pipeline_mode = #tpu.pipeline_mode<synchronous>, transform_indices = @transform_15, window_bounds = array<i64: 32, 32>}, {pipeline_mode = #tpu.pipeline_mode<synchronous>, transform_indices = @transform_16, window_bounds = array<i64: 1, 32>}, {transform_indices = @transform_17, window_bounds = array<i64: 1, 8, 32>}]} {
    %c0 = arith.constant 0 : index
    %c0_0 = arith.constant 0 : index
    %c0_1 = arith.constant 0 : index
    %0 = vector.load %arg1[%c0, %c0_0, %c0_1] : memref<1x8x32xf32, #tpu.memory_space<vmem>>, vector<1x8x32xf32>
    %1 = vector.shape_cast %0 : vector<1x8x32xf32> to vector<8x32xf32>
    %c0_2 = arith.constant 0 : index
    %c0_3 = arith.constant 0 : index
    %2 = vector.load %arg2[%c0_2, %c0_3] : memref<1x32xf32, #tpu.memory_space<vmem>>, vector<1x32xf32>
    %c0_4 = arith.constant 0 : index
    %c0_5 = arith.constant 0 : index
    %3 = vector.load %arg3[%c0_4, %c0_5] : memref<1x32xf32, #tpu.memory_space<vmem>>, vector<1x32xf32>
    %cst = arith.constant dense<0.000000e+00> : vector<8xf32>
    %4 = vector.multi_reduction <add>, %1, %cst [1] : vector<8x32xf32> to vector<8xf32>
    %5 = vector.shape_cast %4 : vector<8xf32> to vector<8x1xf32>
    %cst_6 = arith.constant 3.200000e+01 : f32
    %6 = vector.broadcast %cst_6 : f32 to vector<8x1xf32>
    %7 = arith.divf %5, %6 : vector<8x1xf32>
    %8 = vector.broadcast %7 : vector<8x1xf32> to vector<8x32xf32>
    %9 = arith.subf %1, %8 : vector<8x32xf32>
    %10 = arith.mulf %9, %9 : vector<8x32xf32>
    %cst_7 = arith.constant dense<0.000000e+00> : vector<8xf32>
    %11 = vector.multi_reduction <add>, %10, %cst_7 [1] : vector<8x32xf32> to vector<8xf32>
    %12 = vector.shape_cast %11 : vector<8xf32> to vector<8x1xf32>
    %cst_8 = arith.constant 3.200000e+01 : f32
    %13 = vector.broadcast %cst_8 : f32 to vector<8x1xf32>
    %14 = arith.divf %12, %13 : vector<8x1xf32>
    %15 = vector.broadcast %7 : vector<8x1xf32> to vector<8x32xf32>
    %16 = arith.subf %1, %15 : vector<8x32xf32>
    %cst_9 = arith.constant 9.99999993E-9 : f32
    %17 = vector.broadcast %cst_9 : f32 to vector<8x1xf32>
    %18 = arith.addf %14, %17 : vector<8x1xf32>
    %19 = math.rsqrt %18 : vector<8x1xf32>
    %20 = vector.broadcast %19 : vector<8x1xf32> to vector<8x32xf32>
    %21 = arith.mulf %16, %20 : vector<8x32xf32>
    %22 = vector.broadcast %2 : vector<1x32xf32> to vector<8x32xf32>
    %23 = arith.mulf %21, %22 : vector<8x32xf32>
    %24 = vector.broadcast %3 : vector<1x32xf32> to vector<8x32xf32>
    %25 = arith.addf %23, %24 : vector<8x32xf32>
    %c0_10 = arith.constant 0 : index
    %c0_11 = arith.constant 0 : index
    %26 = vector.load %arg4[%c0_10, %c0_11] : memref<32x96xbf16, #tpu.memory_space<vmem>>, vector<32x96xbf16>
    %c0_12 = arith.constant 0 : index
    %c0_13 = arith.constant 0 : index
    %27 = vector.load %arg5[%c0_12, %c0_13] : memref<1x96xf32, #tpu.memory_space<vmem>>, vector<1x96xf32>
    %28 = arith.truncf %25 : vector<8x32xf32> to vector<8x32xbf16>
    %29 = arith.truncf %1 : vector<8x32xf32> to vector<8x32xbf16>
    %30 = vector.extract_strided_slice %26 {offsets = [0, 0], sizes = [32, 32], strides = [1, 1]} : vector<32x96xbf16> to vector<32x32xbf16>
    %cst_14 = arith.constant dense<0.000000e+00> : vector<8x32xf32>
    %31 = tpu.matmul %28, %30, %cst_14 {dimension_numbers = #tpu.dot_dimension_numbers<[1], [0], [0], [1], [0, 0, 1, 1], [], []>} : vector<8x32xbf16>, vector<32x32xbf16>, vector<8x32xf32> -> vector<8x32xf32>
    %32 = vector.extract_strided_slice %27 {offsets = [0, 0], sizes = [1, 32], strides = [1, 1]} : vector<1x96xf32> to vector<1x32xf32>
    %33 = vector.broadcast %32 : vector<1x32xf32> to vector<8x32xf32>
    %34 = arith.addf %31, %33 : vector<8x32xf32>
    %35 = vector.extract_strided_slice %26 {offsets = [0, 32], sizes = [32, 32], strides = [1, 1]} : vector<32x96xbf16> to vector<32x32xbf16>
    %cst_15 = arith.constant dense<0.000000e+00> : vector<8x32xf32>
    %36 = tpu.matmul %29, %35, %cst_15 {dimension_numbers = #tpu.dot_dimension_numbers<[1], [0], [0], [1], [0, 0, 1, 1], [], []>} : vector<8x32xbf16>, vector<32x32xbf16>, vector<8x32xf32> -> vector<8x32xf32>
    %37 = vector.extract_strided_slice %27 {offsets = [0, 32], sizes = [1, 32], strides = [1, 1]} : vector<1x96xf32> to vector<1x32xf32>
    %38 = vector.broadcast %37 : vector<1x32xf32> to vector<8x32xf32>
    %39 = arith.addf %36, %38 : vector<8x32xf32>
    %40 = vector.extract_strided_slice %26 {offsets = [0, 64], sizes = [32, 32], strides = [1, 1]} : vector<32x96xbf16> to vector<32x32xbf16>
    %cst_16 = arith.constant dense<0.000000e+00> : vector<8x32xf32>
    %41 = tpu.matmul %29, %40, %cst_16 {dimension_numbers = #tpu.dot_dimension_numbers<[1], [0], [0], [1], [0, 0, 1, 1], [], []>} : vector<8x32xbf16>, vector<32x32xbf16>, vector<8x32xf32> -> vector<8x32xf32>
    %42 = vector.extract_strided_slice %27 {offsets = [0, 64], sizes = [1, 32], strides = [1, 1]} : vector<1x96xf32> to vector<1x32xf32>
    %43 = vector.broadcast %42 : vector<1x32xf32> to vector<8x32xf32>
    %44 = arith.addf %41, %43 : vector<8x32xf32>
    %c0_17 = arith.constant 0 : index
    %c0_18 = arith.constant 0 : index
    %c0_19 = arith.constant 0 : index
    %45 = vector.load %arg6[%c0_17, %c0_18, %c0_19] : memref<1x8x32xf32, #tpu.memory_space<vmem>>, vector<1x8x32xf32>
    %46 = vector.shape_cast %45 : vector<1x8x32xf32> to vector<8x32xf32>
    %47 = arith.addf %39, %46 : vector<8x32xf32>
    %c0_20 = arith.constant 0 : index
    %c0_21 = arith.constant 0 : index
    %c0_22 = arith.constant 0 : index
    %48 = vector.load %arg7[%c0_20, %c0_21, %c0_22] : memref<1x8x32xf32, #tpu.memory_space<vmem>>, vector<1x8x32xf32>
    %49 = vector.shape_cast %48 : vector<1x8x32xf32> to vector<8x32xf32>
    %50 = arith.addf %44, %49 : vector<8x32xf32>
    %c0_23 = arith.constant 0 : index
    %c0_24 = arith.constant 0 : index
    %c0_25 = arith.constant 0 : index
    %51 = vector.load %arg10[%c0_23, %c0_24, %c0_25] : memref<1x8x8xi32, #tpu.memory_space<vmem>>, vector<1x8x8xi32>
    %52 = vector.shape_cast %51 : vector<1x8x8xi32> to vector<8x8xi32>
    %c0_26 = arith.constant 0 : index
    %c0_27 = arith.constant 0 : index
    %c0_28 = arith.constant 0 : index
    %53 = vector.load %arg11[%c0_26, %c0_27, %c0_28] : memref<1x8x1xf32, #tpu.memory_space<vmem>>, vector<1x8x1xf32>
    %54 = vector.shape_cast %53 : vector<1x8x1xf32> to vector<8x1xf32>
    %55 = tpu.iota {dimensions = array<i32: 0>} : vector<8x8xi32>
    %56 = tpu.iota {dimensions = array<i32: 1>} : vector<8x8xi32>
    %57 = arith.cmpi sgt, %56, %55 : vector<8x8xi32>
    %cst_29 = arith.constant 5.000000e-01 : f32
    %58 = vector.broadcast %cst_29 : f32 to vector<8x1xf32>
    %59 = arith.cmpf ogt, %54, %58 : vector<8x1xf32>
    %60 = vector.broadcast %59 : vector<8x1xi1> to vector<8x8xi1>
    %61 = arith.ori %57, %60 : vector<8x8xi1>
    %cst_30 = arith.constant 0.000000e+00 : f32
    %62 = vector.broadcast %cst_30 : f32 to vector<64x32xf32>
    %cst_31 = arith.constant 0.000000e+00 : f32
    %63 = vector.broadcast %cst_31 : f32 to vector<64x32xf32>
    %64 = tpu.iota {dimensions = array<i32: 2>} : vector<8x8x24xi32>
    %c0_i32 = arith.constant 0 : i32
    %65 = vector.broadcast %c0_i32 : i32 to vector<8x8x24xi32>
    %66 = arith.addi %64, %65 : vector<8x8x24xi32>
    %67 = vector.shape_cast %52 : vector<8x8xi32> to vector<8x8x1xi32>
    %68 = vector.broadcast %67 : vector<8x8x1xi32> to vector<8x8x24xi32>
    %69 = arith.cmpi eq, %68, %66 : vector<8x8x24xi32>
    %70 = arith.extui %69 : vector<8x8x24xi1> to vector<8x8x24xi32>
    %71 = arith.sitofp %70 : vector<8x8x24xi32> to vector<8x8x24xf32>
    %72 = arith.truncf %71 : vector<8x8x24xf32> to vector<8x8x24xbf16>
    %73 = vector.shape_cast %72 : vector<8x8x24xbf16> to vector<64x24xbf16>
    %c0_32 = arith.constant 0 : index
    %c0_33 = arith.constant 0 : index
    %74 = vector.load %arg8[%c0_32, %c0_33] : memref<24x32xbf16, #tpu.memory_space<vmem>>, vector<24x32xbf16>
    %cst_34 = arith.constant dense<0.000000e+00> : vector<64x32xf32>
    %75 = tpu.matmul %73, %74, %cst_34 {dimension_numbers = #tpu.dot_dimension_numbers<[1], [0], [0], [1], [0, 0, 1, 1], [], []>} : vector<64x24xbf16>, vector<24x32xbf16>, vector<64x32xf32> -> vector<64x32xf32>
    %76 = arith.addf %62, %75 : vector<64x32xf32>
    %c0_35 = arith.constant 0 : index
    %c0_36 = arith.constant 0 : index
    %77 = vector.load %arg9[%c0_35, %c0_36] : memref<24x32xbf16, #tpu.memory_space<vmem>>, vector<24x32xbf16>
    %cst_37 = arith.constant dense<0.000000e+00> : vector<64x32xf32>
    %78 = tpu.matmul %73, %77, %cst_37 {dimension_numbers = #tpu.dot_dimension_numbers<[1], [0], [0], [1], [0, 0, 1, 1], [], []>} : vector<64x24xbf16>, vector<24x32xbf16>, vector<64x32xf32> -> vector<64x32xf32>
    %79 = arith.addf %63, %78 : vector<64x32xf32>
    %80 = vector.shape_cast %76 : vector<64x32xf32> to vector<8x8x32xf32>
    %81 = vector.shape_cast %79 : vector<64x32xf32> to vector<8x8x32xf32>
    %82 = arith.truncf %34 : vector<8x32xf32> to vector<8x32xbf16>
    %83 = arith.truncf %47 : vector<8x32xf32> to vector<8x32xbf16>
    %84 = arith.truncf %50 : vector<8x32xf32> to vector<8x32xbf16>
    %85 = vector.extract_strided_slice %82 {offsets = [0, 0], sizes = [8, 16], strides = [1, 1]} : vector<8x32xbf16> to vector<8x16xbf16>
    %86 = vector.extract_strided_slice %83 {offsets = [0, 0], sizes = [8, 16], strides = [1, 1]} : vector<8x32xbf16> to vector<8x16xbf16>
    %cst_38 = arith.constant dense<0.000000e+00> : vector<8x8xf32>
    %87 = tpu.matmul %85, %86, %cst_38 {dimension_numbers = #tpu.dot_dimension_numbers<[1], [1], [0], [0], [0, 0, 1, 0], [], []>} : vector<8x16xbf16>, vector<8x16xbf16>, vector<8x8xf32> -> vector<8x8xf32>
    %88 = vector.extract_strided_slice %80 {offsets = [0, 0, 0], sizes = [8, 8, 16], strides = [1, 1, 1]} : vector<8x8x32xf32> to vector<8x8x16xf32>
    %89 = vector.extract_strided_slice %34 {offsets = [0, 0], sizes = [8, 16], strides = [1, 1]} : vector<8x32xf32> to vector<8x16xf32>
    %90 = vector.shape_cast %89 : vector<8x16xf32> to vector<8x1x16xf32>
    %91 = vector.broadcast %90 : vector<8x1x16xf32> to vector<8x8x16xf32>
    %92 = arith.mulf %88, %91 : vector<8x8x16xf32>
    %cst_39 = arith.constant dense<0.000000e+00> : vector<8x8xf32>
    %93 = vector.multi_reduction <add>, %92, %cst_39 [2] : vector<8x8x16xf32> to vector<8x8xf32>
    %94 = arith.addf %87, %93 : vector<8x8xf32>
    %cst_40 = arith.constant 2.500000e-01 : f32
    %95 = vector.broadcast %cst_40 : f32 to vector<8x8xf32>
    %96 = arith.mulf %94, %95 : vector<8x8xf32>
    %cst_41 = arith.constant -4.2949673E+9 : f32
    %97 = vector.broadcast %cst_41 : f32 to vector<8x8xf32>
    %98 = arith.select %61, %97, %96 : vector<8x8xi1>, vector<8x8xf32>
    %cst_42 = arith.constant dense<0xFF800000> : vector<8xf32>
    %99 = vector.multi_reduction <maximumf>, %98, %cst_42 [1] : vector<8x8xf32> to vector<8xf32>
    %100 = vector.shape_cast %99 : vector<8xf32> to vector<8x1xf32>
    %101 = vector.broadcast %100 : vector<8x1xf32> to vector<8x8xf32>
    %102 = arith.subf %98, %101 : vector<8x8xf32>
    %103 = math.exp %102 : vector<8x8xf32>
    %cst_43 = arith.constant dense<0.000000e+00> : vector<8xf32>
    %104 = vector.multi_reduction <add>, %103, %cst_43 [1] : vector<8x8xf32> to vector<8xf32>
    %105 = vector.shape_cast %104 : vector<8xf32> to vector<8x1xf32>
    %106 = vector.broadcast %105 : vector<8x1xf32> to vector<8x8xf32>
    %107 = arith.divf %103, %106 : vector<8x8xf32>
    %108 = arith.truncf %107 : vector<8x8xf32> to vector<8x8xbf16>
    %109 = vector.extract_strided_slice %84 {offsets = [0, 0], sizes = [8, 16], strides = [1, 1]} : vector<8x32xbf16> to vector<8x16xbf16>
    %cst_44 = arith.constant dense<0.000000e+00> : vector<8x16xf32>
    %110 = tpu.matmul %108, %109, %cst_44 {dimension_numbers = #tpu.dot_dimension_numbers<[1], [0], [0], [1], [0, 0, 1, 1], [], []>} : vector<8x8xbf16>, vector<8x16xbf16>, vector<8x16xf32> -> vector<8x16xf32>
    %111 = vector.shape_cast %107 : vector<8x8xf32> to vector<8x8x1xf32>
    %112 = vector.extract_strided_slice %81 {offsets = [0, 0, 0], sizes = [8, 8, 16], strides = [1, 1, 1]} : vector<8x8x32xf32> to vector<8x8x16xf32>
    %113 = vector.broadcast %111 : vector<8x8x1xf32> to vector<8x8x16xf32>
    %114 = arith.mulf %113, %112 : vector<8x8x16xf32>
    %cst_45 = arith.constant dense<0.000000e+00> : vector<8x16xf32>
    %115 = vector.multi_reduction <add>, %114, %cst_45 [1] : vector<8x8x16xf32> to vector<8x16xf32>
    %116 = arith.addf %110, %115 : vector<8x16xf32>
    %c0_46 = arith.constant 0 : index
    %c0_47 = arith.constant 0 : index
    %117 = vector.load %arg19[%c0_46, %c0_47] : memref<8x32xf32, #tpu.memory_space<vmem>>, vector<8x16xf32>
    tpu.vector_store %arg19[%c0_46, %c0_47], %116 {strides = array<i32>} : memref<8x32xf32, #tpu.memory_space<vmem>>, vector<8x16xf32>,
    %118 = vector.extract_strided_slice %82 {offsets = [0, 16], sizes = [8, 16], strides = [1, 1]} : vector<8x32xbf16> to vector<8x16xbf16>
    %119 = vector.extract_strided_slice %83 {offsets = [0, 16], sizes = [8, 16], strides = [1, 1]} : vector<8x32xbf16> to vector<8x16xbf16>
    %cst_48 = arith.constant dense<0.000000e+00> : vector<8x8xf32>
    %120 = tpu.matmul %118, %119, %cst_48 {dimension_numbers = #tpu.dot_dimension_numbers<[1], [1], [0], [0], [0, 0, 1, 0], [], []>} : vector<8x16xbf16>, vector<8x16xbf16>, vector<8x8xf32> -> vector<8x8xf32>
    %121 = vector.extract_strided_slice %80 {offsets = [0, 0, 16], sizes = [8, 8, 16], strides = [1, 1, 1]} : vector<8x8x32xf32> to vector<8x8x16xf32>
    %122 = vector.extract_strided_slice %34 {offsets = [0, 16], sizes = [8, 16], strides = [1, 1]} : vector<8x32xf32> to vector<8x16xf32>
    %123 = vector.shape_cast %122 : vector<8x16xf32> to vector<8x1x16xf32>
    %124 = vector.broadcast %123 : vector<8x1x16xf32> to vector<8x8x16xf32>
    %125 = arith.mulf %121, %124 : vector<8x8x16xf32>
    %cst_49 = arith.constant dense<0.000000e+00> : vector<8x8xf32>
    %126 = vector.multi_reduction <add>, %125, %cst_49 [2] : vector<8x8x16xf32> to vector<8x8xf32>
    %127 = arith.addf %120, %126 : vector<8x8xf32>
    %cst_50 = arith.constant 2.500000e-01 : f32
    %128 = vector.broadcast %cst_50 : f32 to vector<8x8xf32>
    %129 = arith.mulf %127, %128 : vector<8x8xf32>
    %cst_51 = arith.constant -4.2949673E+9 : f32
    %130 = vector.broadcast %cst_51 : f32 to vector<8x8xf32>
    %131 = arith.select %61, %130, %129 : vector<8x8xi1>, vector<8x8xf32>
    %cst_52 = arith.constant dense<0xFF800000> : vector<8xf32>
    %132 = vector.multi_reduction <maximumf>, %131, %cst_52 [1] : vector<8x8xf32> to vector<8xf32>
    %133 = vector.shape_cast %132 : vector<8xf32> to vector<8x1xf32>
    %134 = vector.broadcast %133 : vector<8x1xf32> to vector<8x8xf32>
    %135 = arith.subf %131, %134 : vector<8x8xf32>
    %136 = math.exp %135 : vector<8x8xf32>
    %cst_53 = arith.constant dense<0.000000e+00> : vector<8xf32>
    %137 = vector.multi_reduction <add>, %136, %cst_53 [1] : vector<8x8xf32> to vector<8xf32>
    %138 = vector.shape_cast %137 : vector<8xf32> to vector<8x1xf32>
    %139 = vector.broadcast %138 : vector<8x1xf32> to vector<8x8xf32>
    %140 = arith.divf %136, %139 : vector<8x8xf32>
    %141 = arith.truncf %140 : vector<8x8xf32> to vector<8x8xbf16>
    %142 = vector.extract_strided_slice %84 {offsets = [0, 16], sizes = [8, 16], strides = [1, 1]} : vector<8x32xbf16> to vector<8x16xbf16>
    %cst_54 = arith.constant dense<0.000000e+00> : vector<8x16xf32>
    %143 = tpu.matmul %141, %142, %cst_54 {dimension_numbers = #tpu.dot_dimension_numbers<[1], [0], [0], [1], [0, 0, 1, 1], [], []>} : vector<8x8xbf16>, vector<8x16xbf16>, vector<8x16xf32> -> vector<8x16xf32>
    %144 = vector.shape_cast %140 : vector<8x8xf32> to vector<8x8x1xf32>
    %145 = vector.extract_strided_slice %81 {offsets = [0, 0, 16], sizes = [8, 8, 16], strides = [1, 1, 1]} : vector<8x8x32xf32> to vector<8x8x16xf32>
    %146 = vector.broadcast %144 : vector<8x8x1xf32> to vector<8x8x16xf32>
    %147 = arith.mulf %146, %145 : vector<8x8x16xf32>
    %cst_55 = arith.constant dense<0.000000e+00> : vector<8x16xf32>
    %148 = vector.multi_reduction <add>, %147, %cst_55 [1] : vector<8x8x16xf32> to vector<8x16xf32>
    %149 = arith.addf %143, %148 : vector<8x16xf32>
    %c0_56 = arith.constant 0 : index
    %c16 = arith.constant 16 : index
    %150 = vector.load %arg19[%c0_56, %c16] : memref<8x32xf32, #tpu.memory_space<vmem>>, vector<8x16xf32>
    tpu.vector_store %arg19[%c0_56, %c16], %149 {strides = array<i32>} : memref<8x32xf32, #tpu.memory_space<vmem>>, vector<8x16xf32>,
    %c0_57 = arith.constant 0 : index
    %c0_58 = arith.constant 0 : index
    %151 = vector.load %arg19[%c0_57, %c0_58] : memref<8x32xf32, #tpu.memory_space<vmem>>, vector<8x32xf32>
    %152 = arith.addf %25, %151 : vector<8x32xf32>
    %c0_59 = arith.constant 0 : index
    %c0_60 = arith.constant 0 : index
    %153 = vector.load %arg12[%c0_59, %c0_60] : memref<1x32xf32, #tpu.memory_space<vmem>>, vector<1x32xf32>
    %c0_61 = arith.constant 0 : index
    %c0_62 = arith.constant 0 : index
    %154 = vector.load %arg13[%c0_61, %c0_62] : memref<1x32xf32, #tpu.memory_space<vmem>>, vector<1x32xf32>
    %cst_63 = arith.constant dense<0.000000e+00> : vector<8xf32>
    %155 = vector.multi_reduction <add>, %152, %cst_63 [1] : vector<8x32xf32> to vector<8xf32>
    %156 = vector.shape_cast %155 : vector<8xf32> to vector<8x1xf32>
    %cst_64 = arith.constant 3.200000e+01 : f32
    %157 = vector.broadcast %cst_64 : f32 to vector<8x1xf32>
    %158 = arith.divf %156, %157 : vector<8x1xf32>
    %159 = vector.broadcast %158 : vector<8x1xf32> to vector<8x32xf32>
    %160 = arith.subf %152, %159 : vector<8x32xf32>
    %161 = arith.mulf %160, %160 : vector<8x32xf32>
    %cst_65 = arith.constant dense<0.000000e+00> : vector<8xf32>
    %162 = vector.multi_reduction <add>, %161, %cst_65 [1] : vector<8x32xf32> to vector<8xf32>
    %163 = vector.shape_cast %162 : vector<8xf32> to vector<8x1xf32>
    %cst_66 = arith.constant 3.200000e+01 : f32
    %164 = vector.broadcast %cst_66 : f32 to vector<8x1xf32>
    %165 = arith.divf %163, %164 : vector<8x1xf32>
    %166 = vector.broadcast %158 : vector<8x1xf32> to vector<8x32xf32>
    %167 = arith.subf %152, %166 : vector<8x32xf32>
    %cst_67 = arith.constant 9.99999993E-9 : f32
    %168 = vector.broadcast %cst_67 : f32 to vector<8x1xf32>
    %169 = arith.addf %165, %168 : vector<8x1xf32>
    %170 = math.rsqrt %169 : vector<8x1xf32>
    %171 = vector.broadcast %170 : vector<8x1xf32> to vector<8x32xf32>
    %172 = arith.mulf %167, %171 : vector<8x32xf32>
    %173 = vector.broadcast %153 : vector<1x32xf32> to vector<8x32xf32>
    %174 = arith.mulf %172, %173 : vector<8x32xf32>
    %175 = vector.broadcast %154 : vector<1x32xf32> to vector<8x32xf32>
    %176 = arith.addf %174, %175 : vector<8x32xf32>
    %177 = arith.truncf %176 : vector<8x32xf32> to vector<8x32xbf16>
    %c0_68 = arith.constant 0 : index
    %c0_69 = arith.constant 0 : index
    %178 = vector.load %arg14[%c0_68, %c0_69] : memref<32x32xbf16, #tpu.memory_space<vmem>>, vector<32x32xbf16>
    %cst_70 = arith.constant dense<0.000000e+00> : vector<8x32xf32>
    %179 = tpu.matmul %177, %178, %cst_70 {dimension_numbers = #tpu.dot_dimension_numbers<[1], [0], [0], [1], [0, 0, 1, 1], [], []>} : vector<8x32xbf16>, vector<32x32xbf16>, vector<8x32xf32> -> vector<8x32xf32>
    %c0_71 = arith.constant 0 : index
    %c0_72 = arith.constant 0 : index
    %180 = vector.load %arg15[%c0_71, %c0_72] : memref<1x32xf32, #tpu.memory_space<vmem>>, vector<1x32xf32>
    %181 = vector.broadcast %180 : vector<1x32xf32> to vector<8x32xf32>
    %182 = arith.addf %179, %181 : vector<8x32xf32>
    %cst_73 = arith.constant 0.000000e+00 : f32
    %183 = vector.broadcast %cst_73 : f32 to vector<8x32xf32>
    %184 = arith.maximumf %182, %183 : vector<8x32xf32>
    %185 = arith.truncf %184 : vector<8x32xf32> to vector<8x32xbf16>
    %c0_74 = arith.constant 0 : index
    %c0_75 = arith.constant 0 : index
    %186 = vector.load %arg16[%c0_74, %c0_75] : memref<32x32xbf16, #tpu.memory_space<vmem>>, vector<32x32xbf16>
    %cst_76 = arith.constant dense<0.000000e+00> : vector<8x32xf32>
    %187 = tpu.matmul %185, %186, %cst_76 {dimension_numbers = #tpu.dot_dimension_numbers<[1], [0], [0], [1], [0, 0, 1, 1], [], []>} : vector<8x32xbf16>, vector<32x32xbf16>, vector<8x32xf32> -> vector<8x32xf32>
    %c0_77 = arith.constant 0 : index
    %c0_78 = arith.constant 0 : index
    %188 = vector.load %arg17[%c0_77, %c0_78] : memref<1x32xf32, #tpu.memory_space<vmem>>, vector<1x32xf32>
    %189 = vector.broadcast %188 : vector<1x32xf32> to vector<8x32xf32>
    %190 = arith.addf %187, %189 : vector<8x32xf32>
    %191 = arith.addf %190, %176 : vector<8x32xf32>
    %cst_79 = arith.constant 1.000000e+00 : f32
    %192 = vector.broadcast %cst_79 : f32 to vector<8x1xf32>
    %193 = arith.subf %192, %54 : vector<8x1xf32>
    %194 = vector.broadcast %193 : vector<8x1xf32> to vector<8x32xf32>
    %195 = arith.mulf %191, %194 : vector<8x32xf32>
    %c0_80 = arith.constant 0 : index
    %c0_81 = arith.constant 0 : index
    %c0_82 = arith.constant 0 : index
    %196 = vector.load %arg18[%c0_80, %c0_81, %c0_82] : memref<1x8x32xf32, #tpu.memory_space<vmem>>, vector<1x8x32xf32>
    %197 = vector.shape_cast %196 : vector<1x8x32xf32> to vector<8x32xf32>
    %198 = vector.shape_cast %195 : vector<8x32xf32> to vector<1x8x32xf32>
    tpu.vector_store %arg18[%c0_80, %c0_81, %c0_82], %198 {strides = array<i32>} : memref<1x8x32xf32, #tpu.memory_space<vmem>>, vector<1x8x32xf32>,
    return
  }
  func.func @transform_0(%arg0: i32) -> (i32, i32, i32) {
    %c0_i32 = arith.constant 0 : i32
    %c0_i32_0 = arith.constant 0 : i32
    %c0_i32_1 = arith.constant 0 : i32
    return %arg0, %c0_i32, %c0_i32_0 : i32, i32, i32
  }
  func.func @transform_1(%arg0: i32) -> (i32, i32) {
    %c0_i32 = arith.constant 0 : i32
    %c0_i32_0 = arith.constant 0 : i32
    %c0_i32_1 = arith.constant 0 : i32
    return %c0_i32, %c0_i32_0 : i32, i32
  }
  func.func @transform_2(%arg0: i32) -> (i32, i32) {
    %c0_i32 = arith.constant 0 : i32
    %c0_i32_0 = arith.constant 0 : i32
    %c0_i32_1 = arith.constant 0 : i32
    return %c0_i32, %c0_i32_0 : i32, i32
  }
  func.func @transform_3(%arg0: i32) -> (i32, i32) {
    %c0_i32 = arith.constant 0 : i32
    %c0_i32_0 = arith.constant 0 : i32
    %c0_i32_1 = arith.constant 0 : i32
    return %c0_i32, %c0_i32_0 : i32, i32
  }
  func.func @transform_4(%arg0: i32) -> (i32, i32) {
    %c0_i32 = arith.constant 0 : i32
    %c0_i32_0 = arith.constant 0 : i32
    %c0_i32_1 = arith.constant 0 : i32
    return %c0_i32, %c0_i32_0 : i32, i32
  }
  func.func @transform_5(%arg0: i32) -> (i32, i32, i32) {
    %c0_i32 = arith.constant 0 : i32
    %c0_i32_0 = arith.constant 0 : i32
    %c0_i32_1 = arith.constant 0 : i32
    return %arg0, %c0_i32, %c0_i32_0 : i32, i32, i32
  }
  func.func @transform_6(%arg0: i32) -> (i32, i32, i32) {
    %c0_i32 = arith.constant 0 : i32
    %c0_i32_0 = arith.constant 0 : i32
    %c0_i32_1 = arith.constant 0 : i32
    return %arg0, %c0_i32, %c0_i32_0 : i32, i32, i32
  }
  func.func @transform_7(%arg0: i32) -> (i32, i32) {
    %c0_i32 = arith.constant 0 : i32
    %c0_i32_0 = arith.constant 0 : i32
    %c0_i32_1 = arith.constant 0 : i32
    return %c0_i32, %c0_i32_0 : i32, i32
  }
  func.func @transform_8(%arg0: i32) -> (i32, i32) {
    %c0_i32 = arith.constant 0 : i32
    %c0_i32_0 = arith.constant 0 : i32
    %c0_i32_1 = arith.constant 0 : i32
    return %c0_i32, %c0_i32_0 : i32, i32
  }
  func.func @transform_9(%arg0: i32) -> (i32, i32, i32) {
    %c0_i32 = arith.constant 0 : i32
    %c0_i32_0 = arith.constant 0 : i32
    %c0_i32_1 = arith.constant 0 : i32
    return %arg0, %c0_i32, %c0_i32_0 : i32, i32, i32
  }
  func.func @transform_10(%arg0: i32) -> (i32, i32, i32) {
    %c0_i32 = arith.constant 0 : i32
    %c0_i32_0 = arith.constant 0 : i32
    %c0_i32_1 = arith.constant 0 : i32
    return %arg0, %c0_i32, %c0_i32_0 : i32, i32, i32
  }
  func.func @transform_11(%arg0: i32) -> (i32, i32) {
    %c0_i32 = arith.constant 0 : i32
    %c0_i32_0 = arith.constant 0 : i32
    %c0_i32_1 = arith.constant 0 : i32
    return %c0_i32, %c0_i32_0 : i32, i32
  }
  func.func @transform_12(%arg0: i32) -> (i32, i32) {
    %c0_i32 = arith.constant 0 : i32
    %c0_i32_0 = arith.constant 0 : i32
    %c0_i32_1 = arith.constant 0 : i32
    return %c0_i32, %c0_i32_0 : i32, i32
  }
  func.func @transform_13(%arg0: i32) -> (i32, i32) {
    %c0_i32 = arith.constant 0 : i32
    %c0_i32_0 = arith.constant 0 : i32
    %c0_i32_1 = arith.constant 0 : i32
    return %c0_i32, %c0_i32_0 : i32, i32
  }
  func.func @transform_14(%arg0: i32) -> (i32, i32) {
    %c0_i32 = arith.constant 0 : i32
    %c0_i32_0 = arith.constant 0 : i32
    %c0_i32_1 = arith.constant 0 : i32
    return %c0_i32, %c0_i32_0 : i32, i32
  }
  func.func @transform_15(%arg0: i32) -> (i32, i32) {
    %c0_i32 = arith.constant 0 : i32
    %c0_i32_0 = arith.constant 0 : i32
    %c0_i32_1 = arith.constant 0 : i32
    return %c0_i32, %c0_i32_0 : i32, i32
  }
  func.func @transform_16(%arg0: i32) -> (i32, i32) {
    %c0_i32 = arith.constant 0 : i32
    %c0_i32_0 = arith.constant 0 : i32
    %c0_i32_1 = arith.constant 0 : i32
    return %c0_i32, %c0_i32_0 : i32, i32
  }
  func.func @transform_17(%arg0: i32) -> (i32, i32, i32) {
    %c0_i32 = arith.constant 0 : i32
    %c0_i32_0 = arith.constant 0 : i32
    %c0_i32_1 = arith.constant 0 : i32
    return %arg0, %c0_i32, %c0_i32_0 : i32, i32, i32
  }
}

</mosaic_0001>

<llo_original>
// kernel: tpu_custom_call.1
$region0: #{tpu_custom_call.1}
  #allocation0 [shape = 'u32[]', space=smem, size = 0x4, offset = 0x4, fixed_abs, tag = 'smem constant byte address 0x4 - core index']
  #allocation1 [shape = 'u32[144,128]{1,0:T(1,128)}', space=vmem, size = 0x12000, scoped, tag = 'internal scratch']
  #allocation2 [shape = 'f32[8,32]{1,0:T(8,128)}', space=vmem, size = 0x1000, scoped, tag = 'scratch operand']
  %s0 = inlined_call_operand.vmem [shape: f32[2,8,32], index: 0, kind: input, shape index: {}]
  %s1 = inlined_call_operand.hbm [shape: f32[1,32], index: 1, kind: input, shape index: {}]
  %s2 = inlined_call_operand.hbm [shape: f32[1,32], index: 2, kind: input, shape index: {}]
  %s3 = inlined_call_operand.hbm [shape: bf16[32,96], index: 3, kind: input, shape index: {}]
  %s4 = inlined_call_operand.hbm [shape: f32[1,96], index: 4, kind: input, shape index: {}]
  %s5 = inlined_call_operand.hbm [shape: f32[2,8,32], index: 5, kind: input, shape index: {}]
  %s6 = inlined_call_operand.hbm [shape: f32[2,8,32], index: 6, kind: input, shape index: {}]
  %s7 = inlined_call_operand.hbm [shape: bf16[24,32], index: 7, kind: input, shape index: {}]
  %s8 = inlined_call_operand.hbm [shape: bf16[24,32], index: 8, kind: input, shape index: {}]
  %s9 = inlined_call_operand.vmem [shape: s32[2,8,8], index: 9, kind: input, shape index: {}]
  %s10 = inlined_call_operand.vmem [shape: f32[2,8,1], index: 10, kind: input, shape index: {}]
  %s11 = inlined_call_operand.vmem [shape: f32[1,32], index: 11, kind: input, shape index: {}]
  %s12 = inlined_call_operand.vmem [shape: f32[1,32], index: 12, kind: input, shape index: {}]
  %s13 = inlined_call_operand.hbm [shape: bf16[32,32], index: 13, kind: input, shape index: {}]
  %s14 = inlined_call_operand.vmem [shape: f32[1,32], index: 14, kind: input, shape index: {}]
  %s15 = inlined_call_operand.hbm [shape: bf16[32,32], index: 15, kind: input, shape index: {}]
  %s16 = inlined_call_operand.vmem [shape: f32[1,32], index: 16, kind: input, shape index: {}]
  %s17 = inlined_call_operand.hbm [shape: f32[2,8,32], index: 17, kind: output, shape index: {}]
  %s18 = sld [smem:[#allocation0]]
  $region141: #{tpu_custom_call.1} parent=0
    _
  %s20 = ssub.s32 1, %s18
  %s21 = scalar_select 0, %s20, %s18
  $region1: #{tpu_custom_call.1} parent=0
    #allocation3 [shape = 'u8[512]{0}', space=vmem, size = 0x400, scoped, tag = 'input window, operand 1, single buffered']
    #allocation4 [shape = 's32[2]{0}', space=sflag, size = 0x8, scoped, tag = 'scoped memory for tpu_custom_call.1']
    #allocation5 [shape = 's32[2]{0}', space=sflag, size = 0x8, scoped, tag = 'scoped memory for tpu_custom_call.1']
    #allocation6 [shape = 'u8[512]{0}', space=vmem, size = 0x400, scoped, tag = 'input window, operand 2, single buffered']
    #allocation7 [shape = 's32[1]{0}', space=sflag, size = 0x4, scoped, tag = 'scoped memory for tpu_custom_call.1']
    #allocation8 [shape = 'u8[8192]{0}', space=vmem, size = 0x2000, scoped, tag = 'input window, operand 3, single buffered']
    #allocation9 [shape = 'u8[512]{0}', space=vmem, size = 0x400, scoped, tag = 'input window, operand 4, single buffered']
    #allocation10 [shape = 's32[1]{0}', space=sflag, size = 0x4, scoped, tag = 'scoped memory for tpu_custom_call.1']
    #allocation11 [shape = 'u8[8192]{0}', space=vmem, size = 0x2000, scoped, tag = 'input window, operand 5']
    #allocation12 [shape = 'u8[8192]{0}', space=vmem, size = 0x2000, scoped, tag = 'input window, operand 6']
    #allocation13 [shape = 'u8[6144]{0}', space=vmem, size = 0x1800, scoped, tag = 'input window, operand 7, single buffered']
    #allocation14 [shape = 'u8[6144]{0}', space=vmem, size = 0x1800, scoped, tag = 'input window, operand 8, single buffered']
    #allocation15 [shape = 'u8[8192]{0}', space=vmem, size = 0x2000, scoped, tag = 'input window, operand 13, single buffered']
    #allocation16 [shape = 's32[1]{0}', space=sflag, size = 0x4, scoped, tag = 'scoped memory for tpu_custom_call.1']
    #allocation17 [shape = 'u8[8192]{0}', space=vmem, size = 0x2000, scoped, tag = 'input window, operand 15, single buffered']
    #allocation18 [shape = 'u8[8192]{0}', space=vmem, size = 0x2000, scoped, tag = 'output window, operand 0']
    %22 = vsyncpa [#allocation4], 0
    %23 = vsyncpa [#allocation7], 0
    %24 = vsyncpa [#allocation10], 0
    %25 = vsyncpa [#allocation16], 0
    %26 = vsyncpa [#allocation5], 0
    %s27 = scalar_lea.sflag [#allocation5], 1
    %28 = vsyncpa %s27, 0
    loop: start=0, step=1, limit=4
    $region2: #{tpu_custom_call.1} parent=1 // loop_pre_header
      _
    $region3: #{tpu_custom_call.1} parent=1 // loop_header
      %s30 = sphi 0, %s34
      %p31 = scmp.ge.s32.totalorder %s30, 4
      %s40 = sphi 0, %s42
      %s43 = sphi 0, %s40
      %s44 = sphi 0, %s43
      %s60 = sphi 0, %s44
      %s64 = sphi 0, %s64
      %s66 = sphi 0, %s64
      %s67 = sphi 0, %s66
      %s81 = sphi 0, %s67
      %s85 = sphi 0, %s85
      %s87 = sphi 0, %s85
      %s88 = sphi 0, %s87
      %s102 = sphi 0, %s88
      %s106 = sphi 0, %s106
      %s108 = sphi 0, %s106
      %s109 = sphi 0, %s108
      %s123 = sphi 0, %s109
      %s127 = sphi 0, %s127
      %s129 = sphi 0, %s127
      %s130 = sphi 0, %s129
      %s144 = sphi 0, %s130
      %s150 = sphi 0, %s152
      %s153 = sphi 0, %s150
      %s154 = sphi 0, %s153
      %s170 = sphi 0, %s154
      %s176 = sphi 0, %s178
      %s179 = sphi 0, %s176
      %s180 = sphi 0, %s179
      %s196 = sphi 0, %s180
      %s200 = sphi 0, %s200
      %s202 = sphi 0, %s200
      %s203 = sphi 0, %s202
      %s217 = sphi 0, %s203
      %s221 = sphi 0, %s221
      %s223 = sphi 0, %s221
      %s224 = sphi 0, %s223
      %s238 = sphi 0, %s224
      %s244 = sphi 0, %s246
      %s247 = sphi 0, %s244
      %s248 = sphi 0, %s247
      %s264 = sphi 0, %s248
      %s270 = sphi 0, %s272
      %s273 = sphi 0, %s270
      %s274 = sphi 0, %s273
      %s290 = sphi 0, %s274
      %s294 = sphi 0, %s294
      %s296 = sphi 0, %s294
      %s297 = sphi 0, %s296
      %s311 = sphi 0, %s297
      %s315 = sphi 0, %s315
      %s317 = sphi 0, %s315
      %s318 = sphi 0, %s317
      %s332 = sphi 0, %s318
      %s336 = sphi 0, %s336
      %s338 = sphi 0, %s336
      %s339 = sphi 0, %s338
      %s353 = sphi 0, %s339
      %s357 = sphi 0, %s357
      %s359 = sphi 0, %s357
      %s360 = sphi 0, %s359
      %s374 = sphi 0, %s360
      %s378 = sphi 0, %s378
      %s380 = sphi 0, %s378
      %s381 = sphi 0, %s380
      %s395 = sphi 0, %s381
      %s399 = sphi 0, %s399
      %s401 = sphi 0, %s399
      %s402 = sphi 0, %s401
      %s416 = sphi 0, %s402
      %s422 = sphi 0, %s424
      %s425 = sphi 0, %s422
      %s426 = sphi 0, %s425
      %s442 = sphi 0, %s426
    $region4: #{tpu_custom_call.1} parent=1 // loop_header_branch
      %33 = sbr.rel (%p31) target = $region8
    $region5: #{tpu_custom_call.1} parent=1 // loop_body
      %s35 = ssub.s32 %s30, 1
      %s36 = ssub.s32 %s30, 2
      %s37 = sadd.s32 %s30, 1
      %s38 = ssub.s32 %s30, %s37
      %p39 = scmp.eq.s32.totalorder %s38, 0
      %s41 = sadd.s32 %s40, 1
      %s42 = scalar_select %p39, %s40, %s41
      %p45 = pneg %p39
      %p46 = scmp.eq.s32.totalorder %s30, 1
      %p47 = por %p45, %p46
      %p48 = scmp.ne.s32.totalorder %s40, %s43
      %p49 = scmp.eq.s32.totalorder %s30, 0
      %p50 = por %p48, %p49
      %p51 = scmp.ne.s32.totalorder %s40, %s43
      %p52 = scmp.eq.s32.totalorder %s35, 1
      %p53 = por %p51, %p52
      %p54 = scmp.ne.s32.totalorder %s43, %s44
      %p55 = scmp.eq.s32.totalorder %s35, 0
      %p56 = por %p54, %p55
      %p57 = scmp.ne.s32.totalorder %s43, %s44
      %p58 = scmp.eq.s32.totalorder %s36, 1
      %p59 = por %p57, %p58
      %p61 = scmp.ne.s32.totalorder %s44, %s60
      %p62 = scmp.eq.s32.totalorder %s36, 0
      %p63 = por %p61, %p62
      %s65 = sadd.s32 %s64, 1
      %p68 = scmp.eq.s32.totalorder %s30, 1
      %p69 = scmp.ne.s32.totalorder %s64, %s66
      %p70 = scmp.eq.s32.totalorder %s30, 0
      %p71 = por %p69, %p70
      %p72 = scmp.ne.s32.totalorder %s64, %s66
      %p73 = scmp.eq.s32.totalorder %s35, 1
      %p74 = por %p72, %p73
      %p75 = scmp.ne.s32.totalorder %s66, %s67
      %p76 = scmp.eq.s32.totalorder %s35, 0
      %p77 = por %p75, %p76
      %p78 = scmp.ne.s32.totalorder %s66, %s67
      %p79 = scmp.eq.s32.totalorder %s36, 1
      %p80 = por %p78, %p79
      %p82 = scmp.ne.s32.totalorder %s67, %s81
      %p83 = scmp.eq.s32.totalorder %s36, 0
      %p84 = por %p82, %p83
      %s86 = sadd.s32 %s85, 1
      %p89 = scmp.eq.s32.totalorder %s30, 1
      %p90 = scmp.ne.s32.totalorder %s85, %s87
      %p91 = scmp.eq.s32.totalorder %s30, 0
      %p92 = por %p90, %p91
      %p93 = scmp.ne.s32.totalorder %s85, %s87
      %p94 = scmp.eq.s32.totalorder %s35, 1
      %p95 = por %p93, %p94
      %p96 = scmp.ne.s32.totalorder %s87, %s88
      %p97 = scmp.eq.s32.totalorder %s35, 0
      %p98 = por %p96, %p97
      %p99 = scmp.ne.s32.totalorder %s87, %s88
      %p100 = scmp.eq.s32.totalorder %s36, 1
      %p101 = por %p99, %p100
      %p103 = scmp.ne.s32.totalorder %s88, %s102
      %p104 = scmp.eq.s32.totalorder %s36, 0
      %p105 = por %p103, %p104
      %s107 = sadd.s32 %s106, 1
      %p110 = scmp.eq.s32.totalorder %s30, 1
      %p111 = scmp.ne.s32.totalorder %s106, %s108
      %p112 = scmp.eq.s32.totalorder %s30, 0
      %p113 = por %p111, %p112
      %p114 = scmp.ne.s32.totalorder %s106, %s108
      %p115 = scmp.eq.s32.totalorder %s35, 1
      %p116 = por %p114, %p115
      %p117 = scmp.ne.s32.totalorder %s108, %s109
      %p118 = scmp.eq.s32.totalorder %s35, 0
      %p119 = por %p117, %p118
      %p120 = scmp.ne.s32.totalorder %s108, %s109
      %p121 = scmp.eq.s32.totalorder %s36, 1
      %p122 = por %p120, %p121
      %p124 = scmp.ne.s32.totalorder %s109, %s123
      %p125 = scmp.eq.s32.totalorder %s36, 0
      %p126 = por %p124, %p125
      %s128 = sadd.s32 %s127, 1
      %p131 = scmp.eq.s32.totalorder %s30, 1
      %p132 = scmp.ne.s32.totalorder %s127, %s129
      %p133 = scmp.eq.s32.totalorder %s30, 0
      %p134 = por %p132, %p133
      %p135 = scmp.ne.s32.totalorder %s127, %s129
      %p136 = scmp.eq.s32.totalorder %s35, 1
      %p137 = por %p135, %p136
      %p138 = scmp.ne.s32.totalorder %s129, %s130
      %p139 = scmp.eq.s32.totalorder %s35, 0
      %p140 = por %p138, %p139
      %p141 = scmp.ne.s32.totalorder %s129, %s130
      %p142 = scmp.eq.s32.totalorder %s36, 1
      %p143 = por %p141, %p142
      %p145 = scmp.ne.s32.totalorder %s130, %s144
      %p146 = scmp.eq.s32.totalorder %s36, 0
      %p147 = por %p145, %p146
      %s148 = ssub.s32 %s30, %s37
      %p149 = scmp.eq.s32.totalorder %s148, 0
      %s151 = sadd.s32 %s150, 1
      %s152 = scalar_select %p149, %s150, %s151
      %p155 = pneg %p149
      %p156 = scmp.eq.s32.totalorder %s30, 1
      %p157 = por %p155, %p156
      %p158 = scmp.ne.s32.totalorder %s150, %s153
      %p159 = scmp.eq.s32.totalorder %s30, 0
      %p160 = por %p158, %p159
      %p161 = scmp.ne.s32.totalorder %s150, %s153
      %p162 = scmp.eq.s32.totalorder %s35, 1
      %p163 = por %p161, %p162
      %p164 = scmp.ne.s32.totalorder %s153, %s154
      %p165 = scmp.eq.s32.totalorder %s35, 0
      %p166 = por %p164, %p165
      %p167 = scmp.ne.s32.totalorder %s153, %s154
      %p168 = scmp.eq.s32.totalorder %s36, 1
      %p169 = por %p167, %p168
      %p171 = scmp.ne.s32.totalorder %s154, %s170
      %p172 = scmp.eq.s32.totalorder %s36, 0
      %p173 = por %p171, %p172
      %s174 = ssub.s32 %s30, %s37
      %p175 = scmp.eq.s32.totalorder %s174, 0
      %s177 = sadd.s32 %s176, 1
      %s178 = scalar_select %p175, %s176, %s177
      %p181 = pneg %p175
      %p182 = scmp.eq.s32.totalorder %s30, 1
      %p183 = por %p181, %p182
      %p184 = scmp.ne.s32.totalorder %s176, %s179
      %p185 = scmp.eq.s32.totalorder %s30, 0
      %p186 = por %p184, %p185
      %p187 = scmp.ne.s32.totalorder %s176, %s179
      %p188 = scmp.eq.s32.totalorder %s35, 1
      %p189 = por %p187, %p188
      %p190 = scmp.ne.s32.totalorder %s179, %s180
      %p191 = scmp.eq.s32.totalorder %s35, 0
      %p192 = por %p190, %p191
      %p193 = scmp.ne.s32.totalorder %s179, %s180
      %p194 = scmp.eq.s32.totalorder %s36, 1
      %p195 = por %p193, %p194
      %p197 = scmp.ne.s32.totalorder %s180, %s196
      %p198 = scmp.eq.s32.totalorder %s36, 0
      %p199 = por %p197, %p198
      %s201 = sadd.s32 %s200, 1
      %p204 = scmp.eq.s32.totalorder %s30, 1
      %p205 = scmp.ne.s32.totalorder %s200, %s202
      %p206 = scmp.eq.s32.totalorder %s30, 0
      %p207 = por %p205, %p206
      %p208 = scmp.ne.s32.totalorder %s200, %s202
      %p209 = scmp.eq.s32.totalorder %s35, 1
      %p210 = por %p208, %p209
      %p211 = scmp.ne.s32.totalorder %s202, %s203
      %p212 = scmp.eq.s32.totalorder %s35, 0
      %p213 = por %p211, %p212
      %p214 = scmp.ne.s32.totalorder %s202, %s203
      %p215 = scmp.eq.s32.totalorder %s36, 1
      %p216 = por %p214, %p215
      %p218 = scmp.ne.s32.totalorder %s203, %s217
      %p219 = scmp.eq.s32.totalorder %s36, 0
      %p220 = por %p218, %p219
      %s222 = sadd.s32 %s221, 1
      %p225 = scmp.eq.s32.totalorder %s30, 1
      %p226 = scmp.ne.s32.totalorder %s221, %s223
      %p227 = scmp.eq.s32.totalorder %s30, 0
      %p228 = por %p226, %p227
      %p229 = scmp.ne.s32.totalorder %s221, %s223
      %p230 = scmp.eq.s32.totalorder %s35, 1
      %p231 = por %p229, %p230
      %p232 = scmp.ne.s32.totalorder %s223, %s224
      %p233 = scmp.eq.s32.totalorder %s35, 0
      %p234 = por %p232, %p233
      %p235 = scmp.ne.s32.totalorder %s223, %s224
      %p236 = scmp.eq.s32.totalorder %s36, 1
      %p237 = por %p235, %p236
      %p239 = scmp.ne.s32.totalorder %s224, %s238
      %p240 = scmp.eq.s32.totalorder %s36, 0
      %p241 = por %p239, %p240
      %s242 = ssub.s32 %s30, %s37
      %p243 = scmp.eq.s32.totalorder %s242, 0
      %s245 = sadd.s32 %s244, 1
      %s246 = scalar_select %p243, %s244, %s245
      %p249 = pneg %p243
      %p250 = scmp.eq.s32.totalorder %s30, 1
      %p251 = por %p249, %p250
      %p252 = scmp.ne.s32.totalorder %s244, %s247
      %p253 = scmp.eq.s32.totalorder %s30, 0
      %p254 = por %p252, %p253
      %p255 = scmp.ne.s32.totalorder %s244, %s247
      %p256 = scmp.eq.s32.totalorder %s35, 1
      %p257 = por %p255, %p256
      %p258 = scmp.ne.s32.totalorder %s247, %s248
      %p259 = scmp.eq.s32.totalorder %s35, 0
      %p260 = por %p258, %p259
      %p261 = scmp.ne.s32.totalorder %s247, %s248
      %p262 = scmp.eq.s32.totalorder %s36, 1
      %p263 = por %p261, %p262
      %p265 = scmp.ne.s32.totalorder %s248, %s264
      %p266 = scmp.eq.s32.totalorder %s36, 0
      %p267 = por %p265, %p266
      %s268 = ssub.s32 %s30, %s37
      %p269 = scmp.eq.s32.totalorder %s268, 0
      %s271 = sadd.s32 %s270, 1
      %s272 = scalar_select %p269, %s270, %s271
      %p275 = pneg %p269
      %p276 = scmp.eq.s32.totalorder %s30, 1
      %p277 = por %p275, %p276
      %p278 = scmp.ne.s32.totalorder %s270, %s273
      %p279 = scmp.eq.s32.totalorder %s30, 0
      %p280 = por %p278, %p279
      %p281 = scmp.ne.s32.totalorder %s270, %s273
      %p282 = scmp.eq.s32.totalorder %s35, 1
      %p283 = por %p281, %p282
      %p284 = scmp.ne.s32.totalorder %s273, %s274
      %p285 = scmp.eq.s32.totalorder %s35, 0
      %p286 = por %p284, %p285
      %p287 = scmp.ne.s32.totalorder %s273, %s274
      %p288 = scmp.eq.s32.totalorder %s36, 1
      %p289 = por %p287, %p288
      %p291 = scmp.ne.s32.totalorder %s274, %s290
      %p292 = scmp.eq.s32.totalorder %s36, 0
      %p293 = por %p291, %p292
      %s295 = sadd.s32 %s294, 1
      %p298 = scmp.eq.s32.totalorder %s30, 1
      %p299 = scmp.ne.s32.totalorder %s294, %s296
      %p300 = scmp.eq.s32.totalorder %s30, 0
      %p301 = por %p299, %p300
      %p302 = scmp.ne.s32.totalorder %s294, %s296
      %p303 = scmp.eq.s32.totalorder %s35, 1
      %p304 = por %p302, %p303
      %p305 = scmp.ne.s32.totalorder %s296, %s297
      %p306 = scmp.eq.s32.totalorder %s35, 0
      %p307 = por %p305, %p306
      %p308 = scmp.ne.s32.totalorder %s296, %s297
      %p309 = scmp.eq.s32.totalorder %s36, 1
      %p310 = por %p308, %p309
      %p312 = scmp.ne.s32.totalorder %s297, %s311
      %p313 = scmp.eq.s32.totalorder %s36, 0
      %p314 = por %p312, %p313
      %s316 = sadd.s32 %s315, 1
      %p319 = scmp.eq.s32.totalorder %s30, 1
      %p320 = scmp.ne.s32.totalorder %s315, %s317
      %p321 = scmp.eq.s32.totalorder %s30, 0
      %p322 = por %p320, %p321
      %p323 = scmp.ne.s32.totalorder %s315, %s317
      %p324 = scmp.eq.s32.totalorder %s35, 1
      %p325 = por %p323, %p324
      %p326 = scmp.ne.s32.totalorder %s317, %s318
      %p327 = scmp.eq.s32.totalorder %s35, 0
      %p328 = por %p326, %p327
      %p329 = scmp.ne.s32.totalorder %s317, %s318
      %p330 = scmp.eq.s32.totalorder %s36, 1
      %p331 = por %p329, %p330
      %p333 = scmp.ne.s32.totalorder %s318, %s332
      %p334 = scmp.eq.s32.totalorder %s36, 0
      %p335 = por %p333, %p334
      %s337 = sadd.s32 %s336, 1
      %p340 = scmp.eq.s32.totalorder %s30, 1
      %p341 = scmp.ne.s32.totalorder %s336, %s338
      %p342 = scmp.eq.s32.totalorder %s30, 0
      %p343 = por %p341, %p342
      %p344 = scmp.ne.s32.totalorder %s336, %s338
      %p345 = scmp.eq.s32.totalorder %s35, 1
      %p346 = por %p344, %p345
      %p347 = scmp.ne.s32.totalorder %s338, %s339
      %p348 = scmp.eq.s32.totalorder %s35, 0
      %p349 = por %p347, %p348
      %p350 = scmp.ne.s32.totalorder %s338, %s339
      %p351 = scmp.eq.s32.totalorder %s36, 1
      %p352 = por %p350, %p351
      %p354 = scmp.ne.s32.totalorder %s339, %s353
      %p355 = scmp.eq.s32.totalorder %s36, 0
      %p356 = por %p354, %p355
      %s358 = sadd.s32 %s357, 1
      %p361 = scmp.eq.s32.totalorder %s30, 1
      %p362 = scmp.ne.s32.totalorder %s357, %s359
      %p363 = scmp.eq.s32.totalorder %s30, 0
      %p364 = por %p362, %p363
      %p365 = scmp.ne.s32.totalorder %s357, %s359
      %p366 = scmp.eq.s32.totalorder %s35, 1
      %p367 = por %p365, %p366
      %p368 = scmp.ne.s32.totalorder %s359, %s360
      %p369 = scmp.eq.s32.totalorder %s35, 0
      %p370 = por %p368, %p369
      %p371 = scmp.ne.s32.totalorder %s359, %s360
      %p372 = scmp.eq.s32.totalorder %s36, 1
      %p373 = por %p371, %p372
      %p375 = scmp.ne.s32.totalorder %s360, %s374
      %p376 = scmp.eq.s32.totalorder %s36, 0
      %p377 = por %p375, %p376
      %s379 = sadd.s32 %s378, 1
      %p382 = scmp.eq.s32.totalorder %s30, 1
      %p383 = scmp.ne.s32.totalorder %s378, %s380
      %p384 = scmp.eq.s32.totalorder %s30, 0
      %p385 = por %p383, %p384
      %p386 = scmp.ne.s32.totalorder %s378, %s380
      %p387 = scmp.eq.s32.totalorder %s35, 1
      %p388 = por %p386, %p387
      %p389 = scmp.ne.s32.totalorder %s380, %s381
      %p390 = scmp.eq.s32.totalorder %s35, 0
      %p391 = por %p389, %p390
      %p392 = scmp.ne.s32.totalorder %s380, %s381
      %p393 = scmp.eq.s32.totalorder %s36, 1
      %p394 = por %p392, %p393
      %p396 = scmp.ne.s32.totalorder %s381, %s395
      %p397 = scmp.eq.s32.totalorder %s36, 0
      %p398 = por %p396, %p397
      %s400 = sadd.s32 %s399, 1
      %p403 = scmp.eq.s32.totalorder %s30, 1
      %p404 = scmp.ne.s32.totalorder %s399, %s401
      %p405 = scmp.eq.s32.totalorder %s30, 0
      %p406 = por %p404, %p405
      %p407 = scmp.ne.s32.totalorder %s399, %s401
      %p408 = scmp.eq.s32.totalorder %s35, 1
      %p409 = por %p407, %p408
      %p410 = scmp.ne.s32.totalorder %s401, %s402
      %p411 = scmp.eq.s32.totalorder %s35, 0
      %p412 = por %p410, %p411
      %p413 = scmp.ne.s32.totalorder %s401, %s402
      %p414 = scmp.eq.s32.totalorder %s36, 1
      %p415 = por %p413, %p414
      %p417 = scmp.ne.s32.totalorder %s402, %s416
      %p418 = scmp.eq.s32.totalorder %s36, 0
      %p419 = por %p417, %p418
      %s420 = ssub.s32 %s30, %s37
      %p421 = scmp.eq.s32.totalorder %s420, 0
      %s423 = sadd.s32 %s422, 1
      %s424 = scalar_select %p421, %s422, %s423
      %p427 = pneg %p421
      %p428 = scmp.eq.s32.totalorder %s30, 1
      %p429 = por %p427, %p428
      %p430 = scmp.ne.s32.totalorder %s422, %s425
      %p431 = scmp.eq.s32.totalorder %s30, 0
      %p432 = por %p430, %p431
      %p433 = scmp.ne.s32.totalorder %s422, %s425
      %p434 = scmp.eq.s32.totalorder %s35, 1
      %p435 = por %p433, %p434
      %p436 = scmp.ne.s32.totalorder %s425, %s426
      %p437 = scmp.eq.s32.totalorder %s35, 0
      %p438 = por %p436, %p437
      %p439 = scmp.ne.s32.totalorder %s425, %s426
      %p440 = scmp.eq.s32.totalorder %s36, 1
      %p441 = por %p439, %p440
      %p443 = scmp.ne.s32.totalorder %s426, %s442
      %p444 = scmp.eq.s32.totalorder %s36, 0
      %p445 = por %p443, %p444
      %p446 = scmp.le.s32.totalorder 1, %s30
      %p447 = scmp.lt.s32.totalorder %s30, 3
      %p448 = pnand %p446, %p447
      %p449 = pneg %p448
      // Predicated region
      $region9: #{tpu_custom_call.1} parent=5 // pred_check
        _
      $region10: #{tpu_custom_call.1} parent=5 // pred_check_branch
        %451 = sbr.rel (%p448) target = $region12
      $region11: #{tpu_custom_call.1} parent=5 // pred_region
        %s452 = ssub.s32 %s30, 1
        // Predicated region
        $region13: #{tpu_custom_call.1} parent=11 // pred_check
          %p453 = pneg %p77
        $region14: #{tpu_custom_call.1} parent=11 // pred_check_branch
          %455 = sbr.rel (%p453) target = $region16
        $region15: #{tpu_custom_call.1} parent=11 // pred_region
          %s457 = ssub.s32 16, 16
          %458 = vsyncadd [#allocation4], %s457
          %s460 = sshll.u32 [#allocation3], 4
          %s461 = int_to_ptr.vmem [resolvable:$true] %s460
          %463 = dma.hbm_to_vmem [thread:$0]  %s1, 16, %s461, [#allocation4]
        $region16: #{tpu_custom_call.1} parent=11 // pred_fallthru
          _
        // Predicated region
        $region17: #{tpu_custom_call.1} parent=11 // pred_check
          %p464 = pneg %p98
        $region18: #{tpu_custom_call.1} parent=11 // pred_check_branch
          %466 = sbr.rel (%p464) target = $region20
        $region19: #{tpu_custom_call.1} parent=11 // pred_region
          %s468 = ssub.s32 16, 16
          %469 = vsyncadd [#allocation7], %s468
          %s471 = sshll.u32 [#allocation6], 4
          %s472 = int_to_ptr.vmem [resolvable:$true] %s471
          %474 = dma.hbm_to_vmem [thread:$0]  %s2, 16, %s472, [#allocation7]
        $region20: #{tpu_custom_call.1} parent=11 // pred_fallthru
          _
        // Predicated region
        $region21: #{tpu_custom_call.1} parent=11 // pred_check
          %p475 = pneg %p119
        $region22: #{tpu_custom_call.1} parent=11 // pred_check_branch
          %477 = sbr.rel (%p475) target = $region24
        $region23: #{tpu_custom_call.1} parent=11 // pred_region
          %s479 = ssub.s32 256, 256
          %480 = vsyncadd [#allocation7], %s479
          %s481 = sshll.u32 [#allocation8], 4
          %s482 = int_to_ptr.vmem [resolvable:$true] %s481
          %487 = dma.hbm_to_vmem [thread:$0]  %s3, 256, %s482, [#allocation7], 64, 64, 4
        $region24: #{tpu_custom_call.1} parent=11 // pred_fallthru
          _
        // Predicated region
        $region25: #{tpu_custom_call.1} parent=11 // pred_check
          %p488 = pneg %p140
        $region26: #{tpu_custom_call.1} parent=11 // pred_check_branch
          %490 = sbr.rel (%p488) target = $region28
        $region27: #{tpu_custom_call.1} parent=11 // pred_region
          %s492 = ssub.s32 16, 16
          %493 = vsyncadd [#allocation10], %s492
          %s495 = sshll.u32 [#allocation9], 4
          %s496 = int_to_ptr.vmem [resolvable:$true] %s495
          %498 = dma.hbm_to_vmem [thread:$0]  %s4, 16, %s496, [#allocation10]
        $region28: #{tpu_custom_call.1} parent=11 // pred_fallthru
          _
        // Predicated region
        $region29: #{tpu_custom_call.1} parent=11 // pred_check
          %p499 = pneg %p213
        $region30: #{tpu_custom_call.1} parent=11 // pred_check_branch
          %501 = sbr.rel (%p499) target = $region32
        $region31: #{tpu_custom_call.1} parent=11 // pred_region
          %s503 = ssub.s32 192, 192
          %504 = vsyncadd [#allocation7], %s503
          %s505 = sshll.u32 [#allocation13], 4
          %s506 = int_to_ptr.vmem [resolvable:$true] %s505
          %511 = dma.hbm_to_vmem [thread:$0]  %s7, 192, %s506, [#allocation7], 64, 64, 4
        $region32: #{tpu_custom_call.1} parent=11 // pred_fallthru
          _
        // Predicated region
        $region33: #{tpu_custom_call.1} parent=11 // pred_check
          %p512 = pneg %p234
        $region34: #{tpu_custom_call.1} parent=11 // pred_check_branch
          %514 = sbr.rel (%p512) target = $region36
        $region35: #{tpu_custom_call.1} parent=11 // pred_region
          %s516 = ssub.s32 192, 192
          %517 = vsyncadd [#allocation10], %s516
          %s518 = sshll.u32 [#allocation14], 4
          %s519 = int_to_ptr.vmem [resolvable:$true] %s518
          %524 = dma.hbm_to_vmem [thread:$0]  %s8, 192, %s519, [#allocation10], 64, 64, 4
        $region36: #{tpu_custom_call.1} parent=11 // pred_fallthru
          _
        // Predicated region
        $region37: #{tpu_custom_call.1} parent=11 // pred_check
          %p525 = pneg %p307
        $region38: #{tpu_custom_call.1} parent=11 // pred_check_branch
          %527 = sbr.rel (%p525) target = $region40
        $region39: #{tpu_custom_call.1} parent=11 // pred_region
          _
        $region40: #{tpu_custom_call.1} parent=11 // pred_fallthru
          _
        // Predicated region
        $region41: #{tpu_custom_call.1} parent=11 // pred_check
          %p528 = pneg %p328
        $region42: #{tpu_custom_call.1} parent=11 // pred_check_branch
          %530 = sbr.rel (%p528) target = $region44
        $region43: #{tpu_custom_call.1} parent=11 // pred_region
          _
        $region44: #{tpu_custom_call.1} parent=11 // pred_fallthru
          _
        // Predicated region
        $region45: #{tpu_custom_call.1} parent=11 // pred_check
          %p531 = pneg %p349
        $region46: #{tpu_custom_call.1} parent=11 // pred_check_branch
          %533 = sbr.rel (%p531) target = $region48
        $region47: #{tpu_custom_call.1} parent=11 // pred_region
          %s535 = ssub.s32 256, 256
          %536 = vsyncadd [#allocation16], %s535
          %s537 = sshll.u32 [#allocation15], 4
          %s538 = int_to_ptr.vmem [resolvable:$true] %s537
          %543 = dma.hbm_to_vmem [thread:$0]  %s13, 256, %s538, [#allocation16], 64, 64, 4
        $region48: #{tpu_custom_call.1} parent=11 // pred_fallthru
          _
        // Predicated region
        $region49: #{tpu_custom_call.1} parent=11 // pred_check
          %p544 = pneg %p370
        $region50: #{tpu_custom_call.1} parent=11 // pred_check_branch
          %546 = sbr.rel (%p544) target = $region52
        $region51: #{tpu_custom_call.1} parent=11 // pred_region
          _
        $region52: #{tpu_custom_call.1} parent=11 // pred_fallthru
          _
        // Predicated region
        $region53: #{tpu_custom_call.1} parent=11 // pred_check
          %p547 = pneg %p391
        $region54: #{tpu_custom_call.1} parent=11 // pred_check_branch
          %549 = sbr.rel (%p547) target = $region56
        $region55: #{tpu_custom_call.1} parent=11 // pred_region
          %s551 = ssub.s32 256, 256
          %552 = vsyncadd [#allocation16], %s551
          %s553 = sshll.u32 [#allocation17], 4
          %s554 = int_to_ptr.vmem [resolvable:$true] %s553
          %559 = dma.hbm_to_vmem [thread:$0]  %s15, 256, %s554, [#allocation16], 64, 64, 4
        $region56: #{tpu_custom_call.1} parent=11 // pred_fallthru
          _
        // Predicated region
        $region57: #{tpu_custom_call.1} parent=11 // pred_check
          %p560 = pneg %p412
        $region58: #{tpu_custom_call.1} parent=11 // pred_check_branch
          %562 = sbr.rel (%p560) target = $region60
        $region59: #{tpu_custom_call.1} parent=11 // pred_region
          _
        $region60: #{tpu_custom_call.1} parent=11 // pred_fallthru
          _
      $region12: #{tpu_custom_call.1} parent=5 // pred_fallthru
        _
      %p563 = scmp.lt.s32.totalorder %s30, 2
      // Predicated region
      $region61: #{tpu_custom_call.1} parent=5 // pred_check
        %p564 = pneg %p563
      $region62: #{tpu_custom_call.1} parent=5 // pred_check_branch
        %566 = sbr.rel (%p564) target = $region64
      $region63: #{tpu_custom_call.1} parent=5 // pred_region
        // Predicated region
        $region65: #{tpu_custom_call.1} parent=63 // pred_check
          %p567 = pneg %p50
        $region66: #{tpu_custom_call.1} parent=63 // pred_check_branch
          %569 = sbr.rel (%p567) target = $region68
        $region67: #{tpu_custom_call.1} parent=63 // pred_region
          %p570 = scmp.lt.s32.totalorder %s30, 1
          %s571 = scalar_select %p570, %s30, 1
          %s572 = smul.addr %s571, 8
          %s573 = scalar_lea.vmem %s0, %s572
        $region68: #{tpu_custom_call.1} parent=63 // pred_fallthru
          _
        // Predicated region
        $region69: #{tpu_custom_call.1} parent=63 // pred_check
          %p574 = pneg %p160
        $region70: #{tpu_custom_call.1} parent=63 // pred_check_branch
          %576 = sbr.rel (%p574) target = $region72
        $region71: #{tpu_custom_call.1} parent=63 // pred_region
          %s577 = sand.u32 %s30, 1
          %s578 = scalar_lea.sflag [#allocation4], %s577
          %s579 = sand.u32 %s150, 1
          %s580 = smul.addr %s579, 8
          %s581 = scalar_lea.vmem [#allocation11], %s580
          %s583 = ssub.s32 128, 128
          %584 = vsyncadd %s578, %s583
          %s585 = smul.addr %s30, 128
          %s586 = scalar_lea.hbm %s5, %s585
          %s588 = sshll.u32 %s581, 4
          %s589 = int_to_ptr.vmem [resolvable:$true] %s588
          %591 = dma.hbm_to_vmem [thread:$0]  %s586, 128, %s589, %s578
        $region72: #{tpu_custom_call.1} parent=63 // pred_fallthru
          _
        // Predicated region
        $region73: #{tpu_custom_call.1} parent=63 // pred_check
          %p592 = pneg %p186
        $region74: #{tpu_custom_call.1} parent=63 // pred_check_branch
          %594 = sbr.rel (%p592) target = $region76
        $region75: #{tpu_custom_call.1} parent=63 // pred_region
          %s595 = sand.u32 %s30, 1
          %s596 = scalar_lea.sflag [#allocation4], %s595
          %s597 = sand.u32 %s176, 1
          %s598 = smul.addr %s597, 8
          %s599 = scalar_lea.vmem [#allocation12], %s598
          %s601 = ssub.s32 128, 128
          %602 = vsyncadd %s596, %s601
          %s603 = smul.addr %s30, 128
          %s604 = scalar_lea.hbm %s6, %s603
          %s606 = sshll.u32 %s599, 4
          %s607 = int_to_ptr.vmem [resolvable:$true] %s606
          %609 = dma.hbm_to_vmem [thread:$0]  %s604, 128, %s607, %s596
        $region76: #{tpu_custom_call.1} parent=63 // pred_fallthru
          _
        // Predicated region
        $region77: #{tpu_custom_call.1} parent=63 // pred_check
          %p610 = pneg %p254
        $region78: #{tpu_custom_call.1} parent=63 // pred_check_branch
          %612 = sbr.rel (%p610) target = $region80
        $region79: #{tpu_custom_call.1} parent=63 // pred_region
          %p613 = scmp.lt.s32.totalorder %s30, 1
          %s614 = scalar_select %p613, %s30, 1
          %s615 = smul.addr %s614, 8
          %s616 = scalar_lea.vmem %s9, %s615
        $region80: #{tpu_custom_call.1} parent=63 // pred_fallthru
          _
        // Predicated region
        $region81: #{tpu_custom_call.1} parent=63 // pred_check
          %p617 = pneg %p280
        $region82: #{tpu_custom_call.1} parent=63 // pred_check_branch
          %619 = sbr.rel (%p617) target = $region84
        $region83: #{tpu_custom_call.1} parent=63 // pred_region
          %p620 = scmp.lt.s32.totalorder %s30, 1
          %s621 = scalar_select %p620, %s30, 1
          %s622 = smul.addr %s621, 8
          %s623 = scalar_lea.vmem %s10, %s622
        $region84: #{tpu_custom_call.1} parent=63 // pred_fallthru
          _
      $region64: #{tpu_custom_call.1} parent=5 // pred_fallthru
        _
      %p624 = scmp.le.s32.totalorder 1, %s30
      %p625 = scmp.lt.s32.totalorder %s30, 3
      %p626 = pnand %p624, %p625
      %p627 = pneg %p626
      // Predicated region
      $region85: #{tpu_custom_call.1} parent=5 // pred_check
        _
      $region86: #{tpu_custom_call.1} parent=5 // pred_check_branch
        %629 = sbr.rel (%p626) target = $region88
      $region87: #{tpu_custom_call.1} parent=5 // pred_region
        %s630 = ssub.s32 %s30, 1
        // Predicated region
        $region89: #{tpu_custom_call.1} parent=87 // pred_check
          %p631 = pneg %p77
        $region90: #{tpu_custom_call.1} parent=87 // pred_check_branch
          %633 = sbr.rel (%p631) target = $region92
        $region91: #{tpu_custom_call.1} parent=87 // pred_region
          %634 = dma.done [#allocation4], 16
        $region92: #{tpu_custom_call.1} parent=87 // pred_fallthru
          _
        // Predicated region
        $region93: #{tpu_custom_call.1} parent=87 // pred_check
          %p635 = pneg %p98
        $region94: #{tpu_custom_call.1} parent=87 // pred_check_branch
          %637 = sbr.rel (%p635) target = $region96
        $region95: #{tpu_custom_call.1} parent=87 // pred_region
          %638 = dma.done [#allocation7], 16
        $region96: #{tpu_custom_call.1} parent=87 // pred_fallthru
          _
        // Predicated region
        $region97: #{tpu_custom_call.1} parent=87 // pred_check
          %p639 = pneg %p119
        $region98: #{tpu_custom_call.1} parent=87 // pred_check_branch
          %641 = sbr.rel (%p639) target = $region100
        $region99: #{tpu_custom_call.1} parent=87 // pred_region
          %642 = dma.done [#allocation7], 256
        $region100: #{tpu_custom_call.1} parent=87 // pred_fallthru
          _
        // Predicated region
        $region101: #{tpu_custom_call.1} parent=87 // pred_check
          %p643 = pneg %p140
        $region102: #{tpu_custom_call.1} parent=87 // pred_check_branch
          %645 = sbr.rel (%p643) target = $region104
        $region103: #{tpu_custom_call.1} parent=87 // pred_region
          %646 = dma.done [#allocation10], 16
        $region104: #{tpu_custom_call.1} parent=87 // pred_fallthru
          _
        %s647 = sand.u32 %s35, 1
        %s648 = scalar_lea.sflag [#allocation4], %s647
        %s649 = sand.u32 %s153, 1
        %s650 = smul.addr %s649, 8
        %s651 = scalar_lea.vmem [#allocation11], %s650
        // Predicated region
        $region105: #{tpu_custom_call.1} parent=87 // pred_check
          %p652 = pneg %p166
        $region106: #{tpu_custom_call.1} parent=87 // pred_check_branch
          %654 = sbr.rel (%p652) target = $region108
        $region107: #{tpu_custom_call.1} parent=87 // pred_region
          %655 = dma.done %s648, 128
        $region108: #{tpu_custom_call.1} parent=87 // pred_fallthru
          _
        %s656 = sand.u32 %s35, 1
        %s657 = scalar_lea.sflag [#allocation4], %s656
        %s658 = sand.u32 %s179, 1
        %s659 = smul.addr %s658, 8
        %s660 = scalar_lea.vmem [#allocation12], %s659
        // Predicated region
        $region109: #{tpu_custom_call.1} parent=87 // pred_check
          %p661 = pneg %p192
        $region110: #{tpu_custom_call.1} parent=87 // pred_check_branch
          %663 = sbr.rel (%p661) target = $region112
        $region111: #{tpu_custom_call.1} parent=87 // pred_region
          %664 = dma.done %s657, 128
        $region112: #{tpu_custom_call.1} parent=87 // pred_fallthru
          _
        // Predicated region
        $region113: #{tpu_custom_call.1} parent=87 // pred_check
          %p665 = pneg %p213
        $region114: #{tpu_custom_call.1} parent=87 // pred_check_branch
          %667 = sbr.rel (%p665) target = $region116
        $region115: #{tpu_custom_call.1} parent=87 // pred_region
          %668 = dma.done [#allocation7], 192
        $region116: #{tpu_custom_call.1} parent=87 // pred_fallthru
          _
        // Predicated region
        $region117: #{tpu_custom_call.1} parent=87 // pred_check
          %p669 = pneg %p234
        $region118: #{tpu_custom_call.1} parent=87 // pred_check_branch
          %671 = sbr.rel (%p669) target = $region120
        $region119: #{tpu_custom_call.1} parent=87 // pred_region
          %672 = dma.done [#allocation10], 192
        $region120: #{tpu_custom_call.1} parent=87 // pred_fallthru
          _
        // Predicated region
        $region121: #{tpu_custom_call.1} parent=87 // pred_check
          %p673 = pneg %p349
        $region122: #{tpu_custom_call.1} parent=87 // pred_check_branch
          %675 = sbr.rel (%p673) target = $region124
        $region123: #{tpu_custom_call.1} parent=87 // pred_region
          %676 = dma.done [#allocation16], 256
        $region124: #{tpu_custom_call.1} parent=87 // pred_fallthru
          _
        // Predicated region
        $region125: #{tpu_custom_call.1} parent=87 // pred_check
          %p677 = pneg %p391
        $region126: #{tpu_custom_call.1} parent=87 // pred_check_branch
          %679 = sbr.rel (%p677) target = $region128
        $region127: #{tpu_custom_call.1} parent=87 // pred_region
          %680 = dma.done [#allocation16], 256
        $region128: #{tpu_custom_call.1} parent=87 // pred_fallthru
          _
        %p681 = scmp.lt.s32.totalorder %s35, 1
        %s682 = scalar_select %p681, %s35, 1
        %s683 = smul.addr %s682, 8
        %s684 = scalar_lea.vmem %s0, %s683
        %p685 = pneg %p56
        %p686 = pneg %p53
        %p687 = pneg %p77
        %p688 = pneg %p74
        %p689 = pneg %p98
        %p690 = pneg %p95
        %p691 = pneg %p119
        %p692 = pneg %p116
        %p693 = pneg %p140
        %p694 = pneg %p137
        %s695 = sand.u32 %s35, 1
        %s696 = scalar_lea.sflag [#allocation4], %s695
        %s697 = sand.u32 %s153, 1
        %s698 = smul.addr %s697, 8
        %s699 = scalar_lea.vmem [#allocation11], %s698
        %p700 = pneg %p166
        %p701 = pneg %p163
        %s702 = sand.u32 %s35, 1
        %s703 = scalar_lea.sflag [#allocation4], %s702
        %s704 = sand.u32 %s179, 1
        %s705 = smul.addr %s704, 8
        %s706 = scalar_lea.vmem [#allocation12], %s705
        %p707 = pneg %p192
        %p708 = pneg %p189
        %p709 = pneg %p213
        %p710 = pneg %p210
        %p711 = pneg %p234
        %p712 = pneg %p231
        %p713 = scmp.lt.s32.totalorder %s35, 1
        %s714 = scalar_select %p713, %s35, 1
        %s715 = smul.addr %s714, 8
        %s716 = scalar_lea.vmem %s9, %s715
        %p717 = pneg %p260
        %p718 = pneg %p257
        %p719 = scmp.lt.s32.totalorder %s35, 1
        %s720 = scalar_select %p719, %s35, 1
        %s721 = smul.addr %s720, 8
        %s722 = scalar_lea.vmem %s10, %s721
        %p723 = pneg %p286
        %p724 = pneg %p283
        %p725 = pneg %p307
        %p726 = pneg %p304
        %p727 = pneg %p328
        %p728 = pneg %p325
        %p729 = pneg %p349
        %p730 = pneg %p346
        %p731 = pneg %p370
        %p732 = pneg %p367
        %p733 = pneg %p391
        %p734 = pneg %p388
        %p735 = pneg %p412
        %p736 = pneg %p409
        %p737 = pneg %p438
        %p738 = pneg %p435
        %s739 = sand.u32 %s425, 1
        %s740 = scalar_lea.sflag [#allocation5], %s739
        %s741 = sand.u32 %s425, 1
        %s742 = smul.addr %s741, 8
        %s743 = scalar_lea.vmem [#allocation18], %s742
        %p744 = scmp.lt.s32.totalorder %s35, 1
        %s745 = scalar_select %p744, %s35, 1
        %s746 = smul.addr %s745, 8
        %s747 = scalar_lea.vmem %s0, %s746
        %p748 = scmp.lt.s32.totalorder %s35, 1
        %s749 = scalar_select %p748, %s35, 1
        %s750 = smul.addr %s749, 8
        %s751 = scalar_lea.vmem %s9, %s750
        %p752 = scmp.lt.s32.totalorder %s35, 1
        %s753 = scalar_select %p752, %s35, 1
        %s754 = smul.addr %s753, 8
        %s755 = scalar_lea.vmem %s10, %s754
        %v757 = vld [vmem:[%s747] sm:$0xff]
        %v758 = vld [vmem:[#allocation3] sm:$0x1]
        %v759 = vld [vmem:[#allocation6] sm:$0x1]
        %vm760 = vcmask 261120
        %v761 = vsel %vm760, %v757, 0.0
        %762 = vadd.xlane.f32.xlu0 %v761
        %v763 = vpop.xlane.xlu0 %762
        %v764 = vrcp.pop 32.0
        %v765 = vmul.f32 %v763, %v764
        %v766 = vsub.f32 %v757, %v765
        %v767 = vmul.f32 %v766, %v766
        %v768 = vsel %vm760, %v767, 0.0
        %769 = vadd.xlane.f32.xlu0 %v768
        %v770 = vpop.xlane.xlu0 %769
        %v771 = vmul.f32 %v770, %v764
        %v772 = vadd.f32 %v771, 1e-08
        %v773 = vrsqrt.pop %v772
        %v774 = vmul.f32 %v766, %v773
        %v776 = vlaneseq
        %v777 = vshrl.u32 %v776, 7
        %v778 = vsub.s32 0, %v777
        %v779 = vrot.slane %v758, %v778
        %v781 = vmul.f32 %v774, %v779
        %v783 = vlaneseq
        %v784 = vshrl.u32 %v783, 7
        %v785 = vsub.s32 0, %v784
        %v786 = vrot.slane %v759, %v785
        %v788 = vadd.f32 %v781, %v786
        %v789 = vld [vmem:[#allocation8] sm:$0xf]
        %v790 = vld [vmem:[#allocation8 + $0x4] sm:$0xf]
        %v791 = vld [vmem:[#allocation8 + $0x8] sm:$0xf]
        %v792 = vld [vmem:[#allocation8 + $0xc] sm:$0xf]
        %v793 = vld [vmem:[#allocation9] sm:$0x1]
        %v794 = vpack.c.bf16 %v788, %v788
        %v795 = vpack.c.bf16 %v757, %v757
        %v797 = vlaneseq
        %v798 = vshrl.u32 %v797, 7
        %v799 = vsub.s32 0, %v798
        %v800 = vrot.slane %v793, %v799
        %v806 = vunpack.c.l.b16 %v789
        %v807 = vunpack.c.l.b16 %v790
        %v808 = vunpack.c.l.b16 %v791
        %v809 = vunpack.c.l.b16 %v792
        %v810 = vpack.c.b16 %v807, %v806
        %v811 = vpack.c.b16 %v809, %v808
        %v815 = vsel %vm760, %v794, 0
        %817 = vmatprep.subr.bf16.mxu0 0
        %818 = vmatpush1.bf16.msra.mxu0 0
        %819 = vmatprep.subr.bf16.mxu0 0
        %820 = vmatpush1.bf16.msra.mxu0 0
        %821 = vmatprep.subr.bf16.mxu0 0
        %822 = vmatpush1.bf16.msra.mxu0 0
        %823 = vmatprep.subr.bf16.mxu0 0
        %824 = vmatpush1.bf16.msra.mxu0 0
        %825 = vmatprep.subr.bf16.mxu0 0
        %826 = vmatpush1.bf16.msra.mxu0 0
        %827 = vmatprep.subr.bf16.mxu0 0
        %828 = vmatpush1.bf16.msra.mxu0 0
        %829 = vmatprep.subr.bf16.mxu0 0
        %830 = vmatpush1.bf16.msra.mxu0 %v811
        %831 = vmatprep.subr.bf16.mxu0 0
        %832 = vmatpush1.bf16.msra.mxu0 %v810
        %833 = vmatprep.subr.bf16.mxu0 0
        %834 = vmatpush2.bf16.msra.mxu0 0
        %835 = vmatprep.subr.bf16.mxu0 0
        %836 = vmatpush2.bf16.msra.mxu0 0
        %837 = vmatprep.subr.bf16.mxu0 0
        %838 = vmatpush2.bf16.msra.mxu0 0
        %839 = vmatprep.subr.bf16.mxu0 0
        %840 = vmatpush2.bf16.msra.mxu0 0
        %841 = vmatprep.subr.bf16.mxu0 0
        %842 = vmatpush2.bf16.msra.mxu0 0
        %843 = vmatprep.subr.bf16.mxu0 0
        %844 = vmatpush2.bf16.msra.mxu0 0
        %845 = vmatprep.subr.bf16.mxu0 0
        %846 = vmatpush2.bf16.msra.mxu0 0
        %847 = vmatprep.subr.bf16.mxu0 0
        %848 = vmatpush2.bf16.msra.mxu0 0
        %849 = vmatprep.mubr.bf16.mxu0 0
        %850 = vmatmul.mubr.bf16.gmra.mxu0 %v815
        %v851 = vpop.f32.mrf.mxu0
        %v852 = vadd.f32 %v800, %v851
        %v853 = vpop.f32.mrf.mxu0
        %v854 = vpop.f32.mrf.mxu0
        %v855 = vpop.f32.mrf.mxu0
        %856 = vdwg.mxu0
        %857 = vrot.lane.b32.xlu0 %v810, 96
        %v858 = vpop.permute.xlu0 %857
        %859 = vrot.lane.b32.xlu0 %v811, 96
        %v860 = vpop.permute.xlu0 %859
        %863 = vrot.lane.b32.xlu0 %v800, 96
        %v864 = vpop.permute.xlu0 %863
        %v867 = vsel %vm760, %v795, 0
        %869 = vmatprep.subr.bf16.mxu0 0
        %870 = vmatpush1.bf16.msra.mxu0 0
        %871 = vmatprep.subr.bf16.mxu0 0
        %872 = vmatpush1.bf16.msra.mxu0 0
        %873 = vmatprep.subr.bf16.mxu0 0
        %874 = vmatpush1.bf16.msra.mxu0 0
        %875 = vmatprep.subr.bf16.mxu0 0
        %876 = vmatpush1.bf16.msra.mxu0 0
        %877 = vmatprep.subr.bf16.mxu0 0
        %878 = vmatpush1.bf16.msra.mxu0 0
        %879 = vmatprep.subr.bf16.mxu0 0
        %880 = vmatpush1.bf16.msra.mxu0 0
        %881 = vmatprep.subr.bf16.mxu0 0
        %882 = vmatpush1.bf16.msra.mxu0 %v860
        %883 = vmatprep.subr.bf16.mxu0 0
        %884 = vmatpush1.bf16.msra.mxu0 %v858
        %885 = vmatprep.subr.bf16.mxu0 0
        %886 = vmatpush2.bf16.msra.mxu0 0
        %887 = vmatprep.subr.bf16.mxu0 0
        %888 = vmatpush2.bf16.msra.mxu0 0
        %889 = vmatprep.subr.bf16.mxu0 0
        %890 = vmatpush2.bf16.msra.mxu0 0
        %891 = vmatprep.subr.bf16.mxu0 0
        %892 = vmatpush2.bf16.msra.mxu0 0
        %893 = vmatprep.subr.bf16.mxu0 0
        %894 = vmatpush2.bf16.msra.mxu0 0
        %895 = vmatprep.subr.bf16.mxu0 0
        %896 = vmatpush2.bf16.msra.mxu0 0
        %897 = vmatprep.subr.bf16.mxu0 0
        %898 = vmatpush2.bf16.msra.mxu0 0
        %899 = vmatprep.subr.bf16.mxu0 0
        %900 = vmatpush2.bf16.msra.mxu0 0
        %901 = vmatprep.mubr.bf16.mxu0 0
        %902 = vmatmul.mubr.bf16.gmra.mxu0 %v867
        %v903 = vpop.f32.mrf.mxu0
        %v904 = vadd.f32 %v864, %v903
        %v905 = vpop.f32.mrf.mxu0
        %v906 = vpop.f32.mrf.mxu0
        %v907 = vpop.f32.mrf.mxu0
        %908 = vdwg.mxu0
        %909 = vrot.lane.b32.xlu0 %v810, 64
        %v910 = vpop.permute.xlu0 %909
        %911 = vrot.lane.b32.xlu0 %v811, 64
        %v912 = vpop.permute.xlu0 %911
        %915 = vrot.lane.b32.xlu0 %v800, 64
        %v916 = vpop.permute.xlu0 %915
        %918 = vmatprep.subr.bf16.mxu0 0
        %919 = vmatpush1.bf16.msra.mxu0 0
        %920 = vmatprep.subr.bf16.mxu0 0
        %921 = vmatpush1.bf16.msra.mxu0 0
        %922 = vmatprep.subr.bf16.mxu0 0
        %923 = vmatpush1.bf16.msra.mxu0 0
        %924 = vmatprep.subr.bf16.mxu0 0
        %925 = vmatpush1.bf16.msra.mxu0 0
        %926 = vmatprep.subr.bf16.mxu0 0
        %927 = vmatpush1.bf16.msra.mxu0 0
        %928 = vmatprep.subr.bf16.mxu0 0
        %929 = vmatpush1.bf16.msra.mxu0 0
        %930 = vmatprep.subr.bf16.mxu0 0
        %931 = vmatpush1.bf16.msra.mxu0 %v912
        %932 = vmatprep.subr.bf16.mxu0 0
        %933 = vmatpush1.bf16.msra.mxu0 %v910
        %934 = vmatprep.subr.bf16.mxu0 0
        %935 = vmatpush2.bf16.msra.mxu0 0
        %936 = vmatprep.subr.bf16.mxu0 0
        %937 = vmatpush2.bf16.msra.mxu0 0
        %938 = vmatprep.subr.bf16.mxu0 0
        %939 = vmatpush2.bf16.msra.mxu0 0
        %940 = vmatprep.subr.bf16.mxu0 0
        %941 = vmatpush2.bf16.msra.mxu0 0
        %942 = vmatprep.subr.bf16.mxu0 0
        %943 = vmatpush2.bf16.msra.mxu0 0
        %944 = vmatprep.subr.bf16.mxu0 0
        %945 = vmatpush2.bf16.msra.mxu0 0
        %946 = vmatprep.subr.bf16.mxu0 0
        %947 = vmatpush2.bf16.msra.mxu0 0
        %948 = vmatprep.subr.bf16.mxu0 0
        %949 = vmatpush2.bf16.msra.mxu0 0
        %950 = vmatprep.mubr.bf16.mxu0 0
        %951 = vmatmul.mubr.bf16.gmra.mxu0 %v867
        %v952 = vpop.f32.mrf.mxu0
        %v953 = vadd.f32 %v916, %v952
        %v954 = vpop.f32.mrf.mxu0
        %v955 = vpop.f32.mrf.mxu0
        %v956 = vpop.f32.mrf.mxu0
        %957 = vdwg.mxu0
        %v958 = vld [vmem:[%s651] sm:$0xff]
        %v959 = vadd.f32 %v904, %v958
        %v960 = vld [vmem:[%s660] sm:$0xff]
        %v961 = vadd.f32 %v953, %v960
        %v962 = vld [vmem:[%s751] sm:$0xff]
        %v963 = vld [vmem:[%s755] sm:$0xff]
        %v964 = vlaneseq
        %v965 = vshrl.u32 %v964, 7
        %v966 = vlaneseq
        %v967 = vand.u32 %v966, 127
        %vm968 = vcmp.gt.s32.totalorder %v967, %v965
        %vm969 = vcmp.gt.f32.partialorder %v963, 0.5
        %v970 = vsel %vm969, 1, 0
        %971 = vset.pattern.permute.xlu0 0
        %972 = vperm.xlu0 %971, %v970
        %v973 = vpop.permute.xlu0 %972
        %vm974 = vcmp.eq.s32.totalorder %v973, 1
        %vm975 = vmor %vm968, %vm974
        %v976 = vlaneseq
        %v977 = vshrl.u32 %v976, 7
        %v978 = vsub.s32 0, %v977
        %v979 = vrot.slane %v962, %v978
        %981 = vbcast.lane.b32.xlu0 %v979, 256
        %v982 = vpop.permute.xlu0 %981
        %v983 = vlaneseq
        %v984 = vshrl.u32 %v983, 7
        %v985 = vsub.s32 1, %v984
        %v986 = vrot.slane %v962, %v985
        %988 = vbcast.lane.b32.xlu0 %v986, 256
        %v989 = vpop.permute.xlu0 %988
        %v990 = vlaneseq
        %v991 = vshrl.u32 %v990, 7
        %v992 = vsub.s32 2, %v991
        %v993 = vrot.slane %v962, %v992
        %995 = vbcast.lane.b32.xlu0 %v993, 256
        %v996 = vpop.permute.xlu0 %995
        %v997 = vlaneseq
        %v998 = vshrl.u32 %v997, 7
        %v999 = vsub.s32 3, %v998
        %v1000 = vrot.slane %v962, %v999
        %1002 = vbcast.lane.b32.xlu0 %v1000, 256
        %v1003 = vpop.permute.xlu0 %1002
        %v1004 = vlaneseq
        %v1005 = vshrl.u32 %v1004, 7
        %v1006 = vsub.s32 4, %v1005
        %v1007 = vrot.slane %v962, %v1006
        %1009 = vbcast.lane.b32.xlu0 %v1007, 256
        %v1010 = vpop.permute.xlu0 %1009
        %v1011 = vlaneseq
        %v1012 = vshrl.u32 %v1011, 7
        %v1013 = vsub.s32 5, %v1012
        %v1014 = vrot.slane %v962, %v1013
        %1016 = vbcast.lane.b32.xlu0 %v1014, 256
        %v1017 = vpop.permute.xlu0 %1016
        %v1018 = vlaneseq
        %v1019 = vshrl.u32 %v1018, 7
        %v1020 = vsub.s32 6, %v1019
        %v1021 = vrot.slane %v962, %v1020
        %1023 = vbcast.lane.b32.xlu0 %v1021, 256
        %v1024 = vpop.permute.xlu0 %1023
        %v1025 = vlaneseq
        %v1026 = vshrl.u32 %v1025, 7
        %v1027 = vsub.s32 7, %v1026
        %v1028 = vrot.slane %v962, %v1027
        %1030 = vbcast.lane.b32.xlu0 %v1028, 256
        %v1031 = vpop.permute.xlu0 %1030
        %vm1032 = vcmp.eq.s32.totalorder %v982, %v967
        %vm1033 = vcmp.eq.s32.totalorder %v989, %v967
        %vm1034 = vcmp.eq.s32.totalorder %v996, %v967
        %vm1035 = vcmp.eq.s32.totalorder %v1003, %v967
        %vm1036 = vcmp.eq.s32.totalorder %v1010, %v967
        %vm1037 = vcmp.eq.s32.totalorder %v1017, %v967
        %vm1038 = vcmp.eq.s32.totalorder %v1024, %v967
        %vm1039 = vcmp.eq.s32.totalorder %v1031, %v967
        %v1040 = vsel %vm1032, 1, 0
        %v1041 = vsel %vm1033, 1, 0
        %v1042 = vsel %vm1034, 1, 0
        %v1043 = vsel %vm1035, 1, 0
        %v1044 = vsel %vm1036, 1, 0
        %v1045 = vsel %vm1037, 1, 0
        %v1046 = vsel %vm1038, 1, 0
        %v1047 = vsel %vm1039, 1, 0
        %v1048 = vcvt.s32.f32 %v1040
        %v1049 = vcvt.s32.f32 %v1041
        %v1050 = vcvt.s32.f32 %v1042
        %v1051 = vcvt.s32.f32 %v1043
        %v1052 = vcvt.s32.f32 %v1044
        %v1053 = vcvt.s32.f32 %v1045
        %v1054 = vcvt.s32.f32 %v1046
        %v1055 = vcvt.s32.f32 %v1047
        %v1056 = vpack.c.bf16 %v1048, %v1048
        %v1057 = vpack.c.bf16 %v1049, %v1049
        %v1058 = vpack.c.bf16 %v1050, %v1050
        %v1059 = vpack.c.bf16 %v1051, %v1051
        %v1060 = vpack.c.bf16 %v1052, %v1052
        %v1061 = vpack.c.bf16 %v1053, %v1053
        %v1062 = vpack.c.bf16 %v1054, %v1054
        %v1063 = vpack.c.bf16 %v1055, %v1055
        %v1064 = vld [vmem:[#allocation13] sm:$0xf]
        %v1065 = vld [vmem:[#allocation13 + $0x4] sm:$0xf]
        %v1066 = vld [vmem:[#allocation13 + $0x8] sm:$0xf]
        %v1075 = vunpack.c.l.b16 %v1056
        %v1076 = vunpack.c.l.b16 %v1057
        %v1077 = vunpack.c.l.b16 %v1058
        %v1078 = vunpack.c.l.b16 %v1059
        %v1079 = vunpack.c.l.b16 %v1060
        %v1080 = vunpack.c.l.b16 %v1061
        %v1081 = vunpack.c.l.b16 %v1062
        %v1082 = vunpack.c.l.b16 %v1063
        %v1083 = vpack.c.b16 %v1076, %v1075
        %v1084 = vpack.c.b16 %v1078, %v1077
        %v1085 = vpack.c.b16 %v1080, %v1079
        %v1086 = vpack.c.b16 %v1082, %v1081
        %v1090 = vunpack.c.l.b16 %v1064
        %v1091 = vunpack.c.l.b16 %v1065
        %v1092 = vunpack.c.l.b16 %v1066
        %v1093 = vpack.c.b16 %v1091, %v1090
        %v1094 = vpack.c.b16 %v1092, %v1092
        %vm1096 = vcmask 195584
        %v1098 = vsel %vm1096, %v1083, 0
        %v1101 = vsel %vm1096, %v1084, 0
        %v1104 = vsel %vm1096, %v1085, 0
        %v1107 = vsel %vm1096, %v1086, 0
        %vm1109 = vcmask 1043456
        %v1111 = vsel %vm1109, %v1094, 0
        %1113 = vmatprep.subr.bf16.mxu0 0
        %1114 = vmatpush1.bf16.msra.mxu0 0
        %1115 = vmatprep.subr.bf16.mxu0 0
        %1116 = vmatpush1.bf16.msra.mxu0 0
        %1117 = vmatprep.subr.bf16.mxu0 0
        %1118 = vmatpush1.bf16.msra.mxu0 0
        %1119 = vmatprep.subr.bf16.mxu0 0
        %1120 = vmatpush1.bf16.msra.mxu0 0
        %1121 = vmatprep.subr.bf16.mxu0 0
        %1122 = vmatpush1.bf16.msra.mxu0 0
        %1123 = vmatprep.subr.bf16.mxu0 0
        %1124 = vmatpush1.bf16.msra.mxu0 0
        %1125 = vmatprep.subr.bf16.mxu0 0
        %1126 = vmatpush1.bf16.msra.mxu0 %v1111
        %1127 = vmatprep.subr.bf16.mxu0 0
        %1128 = vmatpush1.bf16.msra.mxu0 %v1093
        %1129 = vmatprep.subr.bf16.mxu0 0
        %1130 = vmatpush2.bf16.msra.mxu0 0
        %1131 = vmatprep.subr.bf16.mxu0 0
        %1132 = vmatpush2.bf16.msra.mxu0 0
        %1133 = vmatprep.subr.bf16.mxu0 0
        %1134 = vmatpush2.bf16.msra.mxu0 0
        %1135 = vmatprep.subr.bf16.mxu0 0
        %1136 = vmatpush2.bf16.msra.mxu0 0
        %1137 = vmatprep.subr.bf16.mxu0 0
        %1138 = vmatpush2.bf16.msra.mxu0 0
        %1139 = vmatprep.subr.bf16.mxu0 0
        %1140 = vmatpush2.bf16.msra.mxu0 0
        %1141 = vmatprep.subr.bf16.mxu0 0
        %1142 = vmatpush2.bf16.msra.mxu0 0
        %1143 = vmatprep.subr.bf16.mxu0 0
        %1144 = vmatpush2.bf16.msra.mxu0 0
        %1145 = vmatprep.mubr.bf16.mxu0 0
        %1146 = vmatmul.mubr.bf16.gmra.mxu0 %v1098
        %v1147 = vpop.f32.mrf.mxu0
        %v1148 = vadd.f32 0.0, %v1147
        %v1149 = vpop.f32.mrf.mxu0
        %v1150 = vpop.f32.mrf.mxu0
        %v1151 = vadd.f32 0.0, %v1150
        %v1152 = vpop.f32.mrf.mxu0
        %1153 = vmatprep.mubr.bf16.mxu0 0
        %1154 = vmatmul.mubr.bf16.gmra.mxu0 %v1101
        %v1155 = vpop.f32.mrf.mxu0
        %v1156 = vadd.f32 0.0, %v1155
        %v1157 = vpop.f32.mrf.mxu0
        %v1158 = vpop.f32.mrf.mxu0
        %v1159 = vadd.f32 0.0, %v1158
        %v1160 = vpop.f32.mrf.mxu0
        %1161 = vmatprep.mubr.bf16.mxu0 0
        %1162 = vmatmul.mubr.bf16.gmra.mxu0 %v1104
        %v1163 = vpop.f32.mrf.mxu0
        %v1164 = vadd.f32 0.0, %v1163
        %v1165 = vpop.f32.mrf.mxu0
        %v1166 = vpop.f32.mrf.mxu0
        %v1167 = vadd.f32 0.0, %v1166
        %v1168 = vpop.f32.mrf.mxu0
        %1169 = vmatprep.mubr.bf16.mxu0 0
        %1170 = vmatmul.mubr.bf16.gmra.mxu0 %v1107
        %v1171 = vpop.f32.mrf.mxu0
        %v1172 = vadd.f32 0.0, %v1171
        %v1173 = vpop.f32.mrf.mxu0
        %v1174 = vpop.f32.mrf.mxu0
        %v1175 = vadd.f32 0.0, %v1174
        %v1176 = vpop.f32.mrf.mxu0
        %1177 = vdwg.mxu0
        %v1178 = vld [vmem:[#allocation14] sm:$0xf]
        %v1179 = vld [vmem:[#allocation14 + $0x4] sm:$0xf]
        %v1180 = vld [vmem:[#allocation14 + $0x8] sm:$0xf]
        %v1184 = vunpack.c.l.b16 %v1178
        %v1185 = vunpack.c.l.b16 %v1179
        %v1186 = vunpack.c.l.b16 %v1180
        %v1187 = vpack.c.b16 %v1185, %v1184
        %v1188 = vpack.c.b16 %v1186, %v1186
        %v1191 = vsel %vm1109, %v1188, 0
        %1193 = vmatprep.subr.bf16.mxu0 0
        %1194 = vmatpush1.bf16.msra.mxu0 0
        %1195 = vmatprep.subr.bf16.mxu0 0
        %1196 = vmatpush1.bf16.msra.mxu0 0
        %1197 = vmatprep.subr.bf16.mxu0 0
        %1198 = vmatpush1.bf16.msra.mxu0 0
        %1199 = vmatprep.subr.bf16.mxu0 0
        %1200 = vmatpush1.bf16.msra.mxu0 0
        %1201 = vmatprep.subr.bf16.mxu0 0
        %1202 = vmatpush1.bf16.msra.mxu0 0
        %1203 = vmatprep.subr.bf16.mxu0 0
        %1204 = vmatpush1.bf16.msra.mxu0 0
        %1205 = vmatprep.subr.bf16.mxu0 0
        %1206 = vmatpush1.bf16.msra.mxu0 %v1191
        %1207 = vmatprep.subr.bf16.mxu0 0
        %1208 = vmatpush1.bf16.msra.mxu0 %v1187
        %1209 = vmatprep.subr.bf16.mxu0 0
        %1210 = vmatpush2.bf16.msra.mxu0 0
        %1211 = vmatprep.subr.bf16.mxu0 0
        %1212 = vmatpush2.bf16.msra.mxu0 0
        %1213 = vmatprep.subr.bf16.mxu0 0
        %1214 = vmatpush2.bf16.msra.mxu0 0
        %1215 = vmatprep.subr.bf16.mxu0 0
        %1216 = vmatpush2.bf16.msra.mxu0 0
        %1217 = vmatprep.subr.bf16.mxu0 0
        %1218 = vmatpush2.bf16.msra.mxu0 0
        %1219 = vmatprep.subr.bf16.mxu0 0
        %1220 = vmatpush2.bf16.msra.mxu0 0
        %1221 = vmatprep.subr.bf16.mxu0 0
        %1222 = vmatpush2.bf16.msra.mxu0 0
        %1223 = vmatprep.subr.bf16.mxu0 0
        %1224 = vmatpush2.bf16.msra.mxu0 0
        %1225 = vmatprep.mubr.bf16.mxu0 0
        %1226 = vmatmul.mubr.bf16.gmra.mxu0 %v1098
        %v1227 = vpop.f32.mrf.mxu0
        %v1228 = vadd.f32 0.0, %v1227
        %v1229 = vpop.f32.mrf.mxu0
        %v1230 = vpop.f32.mrf.mxu0
        %v1231 = vadd.f32 0.0, %v1230
        %v1232 = vpop.f32.mrf.mxu0
        %1233 = vmatprep.mubr.bf16.mxu0 0
        %1234 = vmatmul.mubr.bf16.gmra.mxu0 %v1101
        %v1235 = vpop.f32.mrf.mxu0
        %v1236 = vadd.f32 0.0, %v1235
        %v1237 = vpop.f32.mrf.mxu0
        %v1238 = vpop.f32.mrf.mxu0
        %v1239 = vadd.f32 0.0, %v1238
        %v1240 = vpop.f32.mrf.mxu0
        %1241 = vmatprep.mubr.bf16.mxu0 0
        %1242 = vmatmul.mubr.bf16.gmra.mxu0 %v1104
        %v1243 = vpop.f32.mrf.mxu0
        %v1244 = vadd.f32 0.0, %v1243
        %v1245 = vpop.f32.mrf.mxu0
        %v1246 = vpop.f32.mrf.mxu0
        %v1247 = vadd.f32 0.0, %v1246
        %v1248 = vpop.f32.mrf.mxu0
        %1249 = vmatprep.mubr.bf16.mxu0 0
        %1250 = vmatmul.mubr.bf16.gmra.mxu0 %v1107
        %v1251 = vpop.f32.mrf.mxu0
        %v1252 = vadd.f32 0.0, %v1251
        %v1253 = vpop.f32.mrf.mxu0
        %v1254 = vpop.f32.mrf.mxu0
        %v1255 = vadd.f32 0.0, %v1254
        %v1256 = vpop.f32.mrf.mxu0
        %1257 = vdwg.mxu0
        %v1258 = vpack.c.bf16 %v852, %v852
        %v1259 = vpack.c.bf16 %v959, %v959
        %v1260 = vpack.c.bf16 %v961, %v961
        %v1262 = vcombine.high %v852, %v852
        %v1264 = vunpack.c.l.s4 1966171168
        %v1265 = vunpack.c.0.s8 %v1264
        %v1266 = vlaneseq
        %v1267 = vshrl.u32 %v1266, 7
        %v1268 = vsub.s32 %v1265, %v1267
        %v1269 = vrot.slane %v852, %v1268
        %v1271 = vunpack.c.l.s4 1966171168
        %v1272 = vunpack.c.0.s8 %v1271
        %v1273 = vlaneseq
        %v1274 = vshrl.u32 %v1273, 7
        %v1275 = vsub.s32 %v1272, %v1274
        %v1276 = vrot.slane %v1262, %v1275
        %v1277 = vcombine.high %v1269, %v1269
        %v1278 = vcombine.high %v1276, %v1276
        %v1280 = vunpack.c.l.s4 1966171168
        %v1281 = vunpack.c.0.s8 %v1280
        %v1282 = vlaneseq
        %v1283 = vshrl.u32 %v1282, 7
        %v1284 = vsub.s32 %v1281, %v1283
        %v1285 = vrot.slane %v1269, %v1284
        %v1287 = vunpack.c.l.s4 1966171168
        %v1288 = vunpack.c.0.s8 %v1287
        %v1289 = vlaneseq
        %v1290 = vshrl.u32 %v1289, 7
        %v1291 = vsub.s32 %v1288, %v1290
        %v1292 = vrot.slane %v1276, %v1291
        %v1294 = vunpack.c.l.s4 1966171168
        %v1295 = vunpack.c.0.s8 %v1294
        %v1296 = vlaneseq
        %v1297 = vshrl.u32 %v1296, 7
        %v1298 = vsub.s32 %v1295, %v1297
        %v1299 = vrot.slane %v1277, %v1298
        %v1301 = vunpack.c.l.s4 1966171168
        %v1302 = vunpack.c.0.s8 %v1301
        %v1303 = vlaneseq
        %v1304 = vshrl.u32 %v1303, 7
        %v1305 = vsub.s32 %v1302, %v1304
        %v1306 = vrot.slane %v1278, %v1305
        %v1307 = vcombine.high %v1285, %v1285
        %v1308 = vcombine.high %v1292, %v1292
        %v1309 = vcombine.high %v1299, %v1299
        %v1310 = vcombine.high %v1306, %v1306
        %v1311 = vlaneseq
        %v1312 = vshrl.u32 %v1311, 7
        %v1313 = vsub.s32 0, %v1312
        %v1314 = vrot.slane %v1285, %v1313
        %v1315 = vlaneseq
        %v1316 = vshrl.u32 %v1315, 7
        %v1317 = vsub.s32 0, %v1316
        %v1318 = vrot.slane %v1299, %v1317
        %v1319 = vlaneseq
        %v1320 = vshrl.u32 %v1319, 7
        %v1321 = vsub.s32 0, %v1320
        %v1322 = vrot.slane %v1307, %v1321
        %v1323 = vlaneseq
        %v1324 = vshrl.u32 %v1323, 7
        %v1325 = vsub.s32 0, %v1324
        %v1326 = vrot.slane %v1309, %v1325
        %v1327 = vlaneseq
        %v1328 = vshrl.u32 %v1327, 7
        %v1329 = vsub.s32 0, %v1328
        %v1330 = vrot.slane %v1292, %v1329
        %v1331 = vlaneseq
        %v1332 = vshrl.u32 %v1331, 7
        %v1333 = vsub.s32 0, %v1332
        %v1334 = vrot.slane %v1306, %v1333
        %v1335 = vlaneseq
        %v1336 = vshrl.u32 %v1335, 7
        %v1337 = vsub.s32 0, %v1336
        %v1338 = vrot.slane %v1308, %v1337
        %v1339 = vlaneseq
        %v1340 = vshrl.u32 %v1339, 7
        %v1341 = vsub.s32 0, %v1340
        %v1342 = vrot.slane %v1310, %v1341
        %v1351 = vmul.f32 %v1148, %v1314
        %v1352 = vmul.f32 %v1151, %v1318
        %v1353 = vmul.f32 %v1156, %v1322
        %v1354 = vmul.f32 %v1159, %v1326
        %v1355 = vmul.f32 %v1164, %v1330
        %v1356 = vmul.f32 %v1167, %v1334
        %v1357 = vmul.f32 %v1172, %v1338
        %v1358 = vmul.f32 %v1175, %v1342
        %vm1359 = vcmask 130048
        %v1360 = vsel %vm1359, %v1351, 0.0
        %1361 = vadd.xlane.f32.xlu0 %v1360
        %v1362 = vpop.xlane.xlu0 %1361
        %v1363 = vsel %vm1359, %v1352, 0.0
        %1364 = vadd.xlane.f32.xlu0 %v1363
        %v1365 = vpop.xlane.xlu0 %1364
        %v1366 = vsel %vm1359, %v1353, 0.0
        %1367 = vadd.xlane.f32.xlu0 %v1366
        %v1368 = vpop.xlane.xlu0 %1367
        %v1369 = vsel %vm1359, %v1354, 0.0
        %1370 = vadd.xlane.f32.xlu0 %v1369
        %v1371 = vpop.xlane.xlu0 %1370
        %v1372 = vsel %vm1359, %v1355, 0.0
        %1373 = vadd.xlane.f32.xlu0 %v1372
        %v1374 = vpop.xlane.xlu0 %1373
        %v1375 = vsel %vm1359, %v1356, 0.0
        %1376 = vadd.xlane.f32.xlu0 %v1375
        %v1377 = vpop.xlane.xlu0 %1376
        %v1378 = vsel %vm1359, %v1357, 0.0
        %1379 = vadd.xlane.f32.xlu0 %v1378
        %v1380 = vpop.xlane.xlu0 %1379
        %v1381 = vsel %vm1359, %v1358, 0.0
        %1382 = vadd.xlane.f32.xlu0 %v1381
        %v1383 = vpop.xlane.xlu0 %1382
        %v1392 = vlaneseq
        %v1393 = vshrl.u32 %v1392, 7
        %v1394 = vsub.s32 %v967, %v1393
        %v1395 = vrot.slane %v1362, %v1394
        %v1396 = vlaneseq
        %v1397 = vshrl.u32 %v1396, 7
        %v1398 = vsub.s32 %v967, %v1397
        %v1399 = vrot.slane %v1365, %v1398
        %v1400 = vlaneseq
        %v1401 = vshrl.u32 %v1400, 7
        %v1402 = vsub.s32 %v967, %v1401
        %v1403 = vrot.slane %v1368, %v1402
        %v1404 = vlaneseq
        %v1405 = vshrl.u32 %v1404, 7
        %v1406 = vsub.s32 %v967, %v1405
        %v1407 = vrot.slane %v1371, %v1406
        %v1408 = vlaneseq
        %v1409 = vshrl.u32 %v1408, 7
        %v1410 = vsub.s32 %v967, %v1409
        %v1411 = vrot.slane %v1374, %v1410
        %v1412 = vlaneseq
        %v1413 = vshrl.u32 %v1412, 7
        %v1414 = vsub.s32 %v967, %v1413
        %v1415 = vrot.slane %v1377, %v1414
        %v1416 = vlaneseq
        %v1417 = vshrl.u32 %v1416, 7
        %v1418 = vsub.s32 %v967, %v1417
        %v1419 = vrot.slane %v1380, %v1418
        %v1420 = vlaneseq
        %v1421 = vshrl.u32 %v1420, 7
        %v1422 = vsub.s32 %v967, %v1421
        %v1423 = vrot.slane %v1383, %v1422
        %vm1424 = vcmask 1041409
        %v1425 = vsel %vm1424, %v1399, %v1395
        %vm1426 = vcmask 1042434
        %v1427 = vsel %vm1426, %v1403, %v1425
        %vm1428 = vcmask 1043459
        %v1429 = vsel %vm1428, %v1407, %v1427
        %vm1430 = vcmask 1044484
        %v1431 = vsel %vm1430, %v1411, %v1429
        %vm1432 = vcmask 1045509
        %v1433 = vsel %vm1432, %v1415, %v1431
        %vm1434 = vcmask 1046534
        %v1435 = vsel %vm1434, %v1419, %v1433
        %vm1436 = vcmask 1047559
        %v1437 = vsel %vm1436, %v1423, %v1435
        %v1440 = vsel %vm1359, %v1258, 0
        %v1443 = vsel %vm1359, %v1259, 0
        %1445 = vmatprep.subr.bf16.mxu0 0
        %1446 = vmatpush1.bf16.xpose.msra.mxu0 0
        %1447 = vmatprep.subr.bf16.mxu0 0
        %1448 = vmatpush1.bf16.xpose.msra.mxu0 0
        %1449 = vmatprep.subr.bf16.mxu0 0
        %1450 = vmatpush1.bf16.xpose.msra.mxu0 0
        %1451 = vmatprep.subr.bf16.mxu0 0
        %1452 = vmatpush1.bf16.xpose.msra.mxu0 0
        %1453 = vmatprep.subr.bf16.mxu0 0
        %1454 = vmatpush1.bf16.xpose.msra.mxu0 0
        %1455 = vmatprep.subr.bf16.mxu0 0
        %1456 = vmatpush1.bf16.xpose.msra.mxu0 0
        %1457 = vmatprep.subr.bf16.mxu0 0
        %1458 = vmatpush1.bf16.xpose.msra.mxu0 0
        %1459 = vmatprep.subr.bf16.mxu0 0
        %1460 = vmatpush1.bf16.xpose.msra.mxu0 %v1443
        %1461 = vmatprep.subr.bf16.mxu0 0
        %1462 = vmatpush2.bf16.xpose.msra.mxu0 0
        %1463 = vmatprep.subr.bf16.mxu0 0
        %1464 = vmatpush2.bf16.xpose.msra.mxu0 0
        %1465 = vmatprep.subr.bf16.mxu0 0
        %1466 = vmatpush2.bf16.xpose.msra.mxu0 0
        %1467 = vmatprep.subr.bf16.mxu0 0
        %1468 = vmatpush2.bf16.xpose.msra.mxu0 0
        %1469 = vmatprep.subr.bf16.mxu0 0
        %1470 = vmatpush2.bf16.xpose.msra.mxu0 0
        %1471 = vmatprep.subr.bf16.mxu0 0
        %1472 = vmatpush2.bf16.xpose.msra.mxu0 0
        %1473 = vmatprep.subr.bf16.mxu0 0
        %1474 = vmatpush2.bf16.xpose.msra.mxu0 0
        %1475 = vmatprep.subr.bf16.mxu0 0
        %1476 = vmatpush2.bf16.xpose.msra.mxu0 0
        %1477 = vmatprep.mubr.bf16.mxu0 0
        %1478 = vmatmul.mubr.bf16.gmra.mxu0 %v1440
        %v1479 = vpop.f32.mrf.mxu0
        %v1480 = vadd.f32 %v1437, %v1479
        %v1481 = vpop.f32.mrf.mxu0
        %v1482 = vpop.f32.mrf.mxu0
        %v1483 = vpop.f32.mrf.mxu0
        %1484 = vdwg.mxu0
        %v1485 = vmul.f32 %v1480, 0.25
        %v1486 = vsel %vm975, -4.2949673e+09, %v1485
        %vm1487 = vcmask 64512
        %v1488 = vsel %vm1487, %v1486, -inf
        %1489 = vmax.xlane.f32.xlu0 %v1488
        %v1490 = vpop.xlane.xlu0 %1489
        %v1491 = vsub.f32 %v1486, %v1490
        %v1492 = vmul.f32 %v1491, 1.442695
        %v1493 = vpow.pop %v1492
        %v1494 = vsel %vm1487, %v1493, 0.0
        %1495 = vadd.xlane.f32.xlu0 %v1494
        %v1496 = vpop.xlane.xlu0 %1495
        %v1497 = vrcp.pop %v1496
        %v1498 = vmul.f32 %v1493, %v1497
        %v1499 = vpack.c.bf16 %v1498, %v1498
        %v1500 = vlaneseq
        %v1501 = vshrl.u32 %v1500, 7
        %v1502 = vsub.s32 0, %v1501
        %v1503 = vrot.slane %v1498, %v1502
        %1505 = vbcast.lane.b32.xlu0 %v1503, 256
        %v1506 = vpop.permute.xlu0 %1505
        %v1507 = vlaneseq
        %v1508 = vshrl.u32 %v1507, 7
        %v1509 = vsub.s32 1, %v1508
        %v1510 = vrot.slane %v1498, %v1509
        %1512 = vbcast.lane.b32.xlu0 %v1510, 256
        %v1513 = vpop.permute.xlu0 %1512
        %v1514 = vlaneseq
        %v1515 = vshrl.u32 %v1514, 7
        %v1516 = vsub.s32 2, %v1515
        %v1517 = vrot.slane %v1498, %v1516
        %1519 = vbcast.lane.b32.xlu0 %v1517, 256
        %v1520 = vpop.permute.xlu0 %1519
        %v1521 = vlaneseq
        %v1522 = vshrl.u32 %v1521, 7
        %v1523 = vsub.s32 3, %v1522
        %v1524 = vrot.slane %v1498, %v1523
        %1526 = vbcast.lane.b32.xlu0 %v1524, 256
        %v1527 = vpop.permute.xlu0 %1526
        %v1528 = vlaneseq
        %v1529 = vshrl.u32 %v1528, 7
        %v1530 = vsub.s32 4, %v1529
        %v1531 = vrot.slane %v1498, %v1530
        %1533 = vbcast.lane.b32.xlu0 %v1531, 256
        %v1534 = vpop.permute.xlu0 %1533
        %v1535 = vlaneseq
        %v1536 = vshrl.u32 %v1535, 7
        %v1537 = vsub.s32 5, %v1536
        %v1538 = vrot.slane %v1498, %v1537
        %1540 = vbcast.lane.b32.xlu0 %v1538, 256
        %v1541 = vpop.permute.xlu0 %1540
        %v1542 = vlaneseq
        %v1543 = vshrl.u32 %v1542, 7
        %v1544 = vsub.s32 6, %v1543
        %v1545 = vrot.slane %v1498, %v1544
        %1547 = vbcast.lane.b32.xlu0 %v1545, 256
        %v1548 = vpop.permute.xlu0 %1547
        %v1549 = vlaneseq
        %v1550 = vshrl.u32 %v1549, 7
        %v1551 = vsub.s32 7, %v1550
        %v1552 = vrot.slane %v1498, %v1551
        %1554 = vbcast.lane.b32.xlu0 %v1552, 256
        %v1555 = vpop.permute.xlu0 %1554
        %v1556 = vmul.f32 %v1506, %v1228
        %v1557 = vmul.f32 %v1513, %v1231
        %v1558 = vmul.f32 %v1520, %v1236
        %v1559 = vmul.f32 %v1527, %v1239
        %v1560 = vmul.f32 %v1534, %v1244
        %v1561 = vmul.f32 %v1541, %v1247
        %v1562 = vmul.f32 %v1548, %v1252
        %v1563 = vmul.f32 %v1555, %v1255
        %v1564 = vsel %vm1359, %v1556, 0.0
        %v1565 = vrot.slane %v1564, 4
        %v1566 = vadd.f32 %v1564, %v1565
        %v1567 = vrot.slane %v1566, 2
        %v1568 = vadd.f32 %v1566, %v1567
        %v1569 = vrot.slane %v1568, 1
        %v1570 = vadd.f32 %v1568, %v1569
        %v1571 = vsel %vm1359, %v1557, 0.0
        %v1572 = vrot.slane %v1571, 4
        %v1573 = vadd.f32 %v1571, %v1572
        %v1574 = vrot.slane %v1573, 2
        %v1575 = vadd.f32 %v1573, %v1574
        %v1576 = vrot.slane %v1575, 1
        %v1577 = vadd.f32 %v1575, %v1576
        %v1578 = vsel %vm1359, %v1558, 0.0
        %v1579 = vrot.slane %v1578, 4
        %v1580 = vadd.f32 %v1578, %v1579
        %v1581 = vrot.slane %v1580, 2
        %v1582 = vadd.f32 %v1580, %v1581
        %v1583 = vrot.slane %v1582, 1
        %v1584 = vadd.f32 %v1582, %v1583
        %v1585 = vsel %vm1359, %v1559, 0.0
        %v1586 = vrot.slane %v1585, 4
        %v1587 = vadd.f32 %v1585, %v1586
        %v1588 = vrot.slane %v1587, 2
        %v1589 = vadd.f32 %v1587, %v1588
        %v1590 = vrot.slane %v1589, 1
        %v1591 = vadd.f32 %v1589, %v1590
        %v1592 = vsel %vm1359, %v1560, 0.0
        %v1593 = vrot.slane %v1592, 4
        %v1594 = vadd.f32 %v1592, %v1593
        %v1595 = vrot.slane %v1594, 2
        %v1596 = vadd.f32 %v1594, %v1595
        %v1597 = vrot.slane %v1596, 1
        %v1598 = vadd.f32 %v1596, %v1597
        %v1599 = vsel %vm1359, %v1561, 0.0
        %v1600 = vrot.slane %v1599, 4
        %v1601 = vadd.f32 %v1599, %v1600
        %v1602 = vrot.slane %v1601, 2
        %v1603 = vadd.f32 %v1601, %v1602
        %v1604 = vrot.slane %v1603, 1
        %v1605 = vadd.f32 %v1603, %v1604
        %v1606 = vsel %vm1359, %v1562, 0.0
        %v1607 = vrot.slane %v1606, 4
        %v1608 = vadd.f32 %v1606, %v1607
        %v1609 = vrot.slane %v1608, 2
        %v1610 = vadd.f32 %v1608, %v1609
        %v1611 = vrot.slane %v1610, 1
        %v1612 = vadd.f32 %v1610, %v1611
        %v1613 = vsel %vm1359, %v1563, 0.0
        %v1614 = vrot.slane %v1613, 4
        %v1615 = vadd.f32 %v1613, %v1614
        %v1616 = vrot.slane %v1615, 2
        %v1617 = vadd.f32 %v1615, %v1616
        %v1618 = vrot.slane %v1617, 1
        %v1619 = vadd.f32 %v1617, %v1618
        %v1628 = vsel %vm1424, %v1577, %v1570
        %v1629 = vsel %vm1426, %v1584, %v1628
        %v1630 = vsel %vm1428, %v1591, %v1629
        %v1631 = vsel %vm1430, %v1598, %v1630
        %v1632 = vsel %vm1432, %v1605, %v1631
        %v1633 = vsel %vm1434, %v1612, %v1632
        %v1634 = vsel %vm1436, %v1619, %v1633
        %v1637 = vsel %vm1487, %v1499, 0
        %v1640 = vsel %vm1109, %v1260, 0
        %1642 = vmatprep.subr.bf16.mxu0 0
        %1643 = vmatpush1.bf16.msra.mxu0 0
        %1644 = vmatprep.subr.bf16.mxu0 0
        %1645 = vmatpush1.bf16.msra.mxu0 0
        %1646 = vmatprep.subr.bf16.mxu0 0
        %1647 = vmatpush1.bf16.msra.mxu0 0
        %1648 = vmatprep.subr.bf16.mxu0 0
        %1649 = vmatpush1.bf16.msra.mxu0 0
        %1650 = vmatprep.subr.bf16.mxu0 0
        %1651 = vmatpush1.bf16.msra.mxu0 0
        %1652 = vmatprep.subr.bf16.mxu0 0
        %1653 = vmatpush1.bf16.msra.mxu0 0
        %1654 = vmatprep.subr.bf16.mxu0 0
        %1655 = vmatpush1.bf16.msra.mxu0 0
        %1656 = vmatprep.subr.bf16.mxu0 0
        %1657 = vmatpush1.bf16.msra.mxu0 %v1640
        %1658 = vmatprep.subr.bf16.mxu0 0
        %1659 = vmatpush2.bf16.msra.mxu0 0
        %1660 = vmatprep.subr.bf16.mxu0 0
        %1661 = vmatpush2.bf16.msra.mxu0 0
        %1662 = vmatprep.subr.bf16.mxu0 0
        %1663 = vmatpush2.bf16.msra.mxu0 0
        %1664 = vmatprep.subr.bf16.mxu0 0
        %1665 = vmatpush2.bf16.msra.mxu0 0
        %1666 = vmatprep.subr.bf16.mxu0 0
        %1667 = vmatpush2.bf16.msra.mxu0 0
        %1668 = vmatprep.subr.bf16.mxu0 0
        %1669 = vmatpush2.bf16.msra.mxu0 0
        %1670 = vmatprep.subr.bf16.mxu0 0
        %1671 = vmatpush2.bf16.msra.mxu0 0
        %1672 = vmatprep.subr.bf16.mxu0 0
        %1673 = vmatpush2.bf16.msra.mxu0 0
        %1674 = vmatprep.mubr.bf16.mxu0 0
        %1675 = vmatmul.mubr.bf16.gmra.mxu0 %v1637
        %v1676 = vpop.f32.mrf.mxu0
        %v1677 = vadd.f32 %v1634, %v1676
        %v1678 = vpop.f32.mrf.mxu0
        %v1679 = vpop.f32.mrf.mxu0
        %v1680 = vpop.f32.mrf.mxu0
        %1681 = vdwg.mxu0
        %1682 = vst.msk [vmem:[#allocation2] sm:$0xff] %vm1359, %v1677
        %1691 = vrot.lane.b32.xlu0 %v1351, 112
        %v1692 = vpop.permute.xlu0 %1691
        %1693 = vrot.lane.b32.xlu0 %v1352, 112
        %v1694 = vpop.permute.xlu0 %1693
        %1695 = vrot.lane.b32.xlu0 %v1353, 112
        %v1696 = vpop.permute.xlu0 %1695
        %1697 = vrot.lane.b32.xlu0 %v1354, 112
        %v1698 = vpop.permute.xlu0 %1697
        %1699 = vrot.lane.b32.xlu0 %v1355, 112
        %v1700 = vpop.permute.xlu0 %1699
        %1701 = vrot.lane.b32.xlu0 %v1356, 112
        %v1702 = vpop.permute.xlu0 %1701
        %1703 = vrot.lane.b32.xlu0 %v1357, 112
        %v1704 = vpop.permute.xlu0 %1703
        %1705 = vrot.lane.b32.xlu0 %v1358, 112
        %v1706 = vpop.permute.xlu0 %1705
        %v1715 = vsel %vm1359, %v1692, 0.0
        %1716 = vadd.xlane.f32.xlu0 %v1715
        %v1717 = vpop.xlane.xlu0 %1716
        %v1718 = vsel %vm1359, %v1694, 0.0
        %1719 = vadd.xlane.f32.xlu0 %v1718
        %v1720 = vpop.xlane.xlu0 %1719
        %v1721 = vsel %vm1359, %v1696, 0.0
        %1722 = vadd.xlane.f32.xlu0 %v1721
        %v1723 = vpop.xlane.xlu0 %1722
        %v1724 = vsel %vm1359, %v1698, 0.0
        %1725 = vadd.xlane.f32.xlu0 %v1724
        %v1726 = vpop.xlane.xlu0 %1725
        %v1727 = vsel %vm1359, %v1700, 0.0
        %1728 = vadd.xlane.f32.xlu0 %v1727
        %v1729 = vpop.xlane.xlu0 %1728
        %v1730 = vsel %vm1359, %v1702, 0.0
        %1731 = vadd.xlane.f32.xlu0 %v1730
        %v1732 = vpop.xlane.xlu0 %1731
        %v1733 = vsel %vm1359, %v1704, 0.0
        %1734 = vadd.xlane.f32.xlu0 %v1733
        %v1735 = vpop.xlane.xlu0 %1734
        %v1736 = vsel %vm1359, %v1706, 0.0
        %1737 = vadd.xlane.f32.xlu0 %v1736
        %v1738 = vpop.xlane.xlu0 %1737
        %1740 = vrot.lane.b32.xlu0 %v1258, 112
        %v1741 = vpop.permute.xlu0 %1740
        %1743 = vrot.lane.b32.xlu0 %v1259, 112
        %v1744 = vpop.permute.xlu0 %1743
        %v1753 = vlaneseq
        %v1754 = vshrl.u32 %v1753, 7
        %v1755 = vsub.s32 %v967, %v1754
        %v1756 = vrot.slane %v1717, %v1755
        %v1757 = vlaneseq
        %v1758 = vshrl.u32 %v1757, 7
        %v1759 = vsub.s32 %v967, %v1758
        %v1760 = vrot.slane %v1720, %v1759
        %v1761 = vlaneseq
        %v1762 = vshrl.u32 %v1761, 7
        %v1763 = vsub.s32 %v967, %v1762
        %v1764 = vrot.slane %v1723, %v1763
        %v1765 = vlaneseq
        %v1766 = vshrl.u32 %v1765, 7
        %v1767 = vsub.s32 %v967, %v1766
        %v1768 = vrot.slane %v1726, %v1767
        %v1769 = vlaneseq
        %v1770 = vshrl.u32 %v1769, 7
        %v1771 = vsub.s32 %v967, %v1770
        %v1772 = vrot.slane %v1729, %v1771
        %v1773 = vlaneseq
        %v1774 = vshrl.u32 %v1773, 7
        %v1775 = vsub.s32 %v967, %v1774
        %v1776 = vrot.slane %v1732, %v1775
        %v1777 = vlaneseq
        %v1778 = vshrl.u32 %v1777, 7
        %v1779 = vsub.s32 %v967, %v1778
        %v1780 = vrot.slane %v1735, %v1779
        %v1781 = vlaneseq
        %v1782 = vshrl.u32 %v1781, 7
        %v1783 = vsub.s32 %v967, %v1782
        %v1784 = vrot.slane %v1738, %v1783
        %v1785 = vsel %vm1424, %v1760, %v1756
        %v1786 = vsel %vm1426, %v1764, %v1785
        %v1787 = vsel %vm1428, %v1768, %v1786
        %v1788 = vsel %vm1430, %v1772, %v1787
        %v1789 = vsel %vm1432, %v1776, %v1788
        %v1790 = vsel %vm1434, %v1780, %v1789
        %v1791 = vsel %vm1436, %v1784, %v1790
        %v1794 = vsel %vm1359, %v1741, 0
        %v1797 = vsel %vm1359, %v1744, 0
        %1799 = vmatprep.subr.bf16.mxu0 0
        %1800 = vmatpush1.bf16.xpose.msra.mxu0 0
        %1801 = vmatprep.subr.bf16.mxu0 0
        %1802 = vmatpush1.bf16.xpose.msra.mxu0 0
        %1803 = vmatprep.subr.bf16.mxu0 0
        %1804 = vmatpush1.bf16.xpose.msra.mxu0 0
        %1805 = vmatprep.subr.bf16.mxu0 0
        %1806 = vmatpush1.bf16.xpose.msra.mxu0 0
        %1807 = vmatprep.subr.bf16.mxu0 0
        %1808 = vmatpush1.bf16.xpose.msra.mxu0 0
        %1809 = vmatprep.subr.bf16.mxu0 0
        %1810 = vmatpush1.bf16.xpose.msra.mxu0 0
        %1811 = vmatprep.subr.bf16.mxu0 0
        %1812 = vmatpush1.bf16.xpose.msra.mxu0 0
        %1813 = vmatprep.subr.bf16.mxu0 0
        %1814 = vmatpush1.bf16.xpose.msra.mxu0 %v1797
        %1815 = vmatprep.subr.bf16.mxu0 0
        %1816 = vmatpush2.bf16.xpose.msra.mxu0 0
        %1817 = vmatprep.subr.bf16.mxu0 0
        %1818 = vmatpush2.bf16.xpose.msra.mxu0 0
        %1819 = vmatprep.subr.bf16.mxu0 0
        %1820 = vmatpush2.bf16.xpose.msra.mxu0 0
        %1821 = vmatprep.subr.bf16.mxu0 0
        %1822 = vmatpush2.bf16.xpose.msra.mxu0 0
        %1823 = vmatprep.subr.bf16.mxu0 0
        %1824 = vmatpush2.bf16.xpose.msra.mxu0 0
        %1825 = vmatprep.subr.bf16.mxu0 0
        %1826 = vmatpush2.bf16.xpose.msra.mxu0 0
        %1827 = vmatprep.subr.bf16.mxu0 0
        %1828 = vmatpush2.bf16.xpose.msra.mxu0 0
        %1829 = vmatprep.subr.bf16.mxu0 0
        %1830 = vmatpush2.bf16.xpose.msra.mxu0 0
        %1831 = vmatprep.mubr.bf16.mxu0 0
        %1832 = vmatmul.mubr.bf16.gmra.mxu0 %v1794
        %v1833 = vpop.f32.mrf.mxu0
        %v1834 = vadd.f32 %v1791, %v1833
        %v1835 = vpop.f32.mrf.mxu0
        %v1836 = vpop.f32.mrf.mxu0
        %v1837 = vpop.f32.mrf.mxu0
        %1838 = vdwg.mxu0
        %v1839 = vmul.f32 %v1834, 0.25
        %v1840 = vsel %vm975, -4.2949673e+09, %v1839
        %v1841 = vsel %vm1487, %v1840, -inf
        %1842 = vmax.xlane.f32.xlu0 %v1841
        %v1843 = vpop.xlane.xlu0 %1842
        %v1844 = vsub.f32 %v1840, %v1843
        %v1845 = vmul.f32 %v1844, 1.442695
        %v1846 = vpow.pop %v1845
        %v1847 = vsel %vm1487, %v1846, 0.0
        %1848 = vadd.xlane.f32.xlu0 %v1847
        %v1849 = vpop.xlane.xlu0 %1848
        %v1850 = vrcp.pop %v1849
        %v1851 = vmul.f32 %v1846, %v1850
        %v1852 = vpack.c.bf16 %v1851, %v1851
        %v1853 = vlaneseq
        %v1854 = vshrl.u32 %v1853, 7
        %v1855 = vsub.s32 0, %v1854
        %v1856 = vrot.slane %v1851, %v1855
        %1858 = vbcast.lane.b32.xlu0 %v1856, 256
        %v1859 = vpop.permute.xlu0 %1858
        %v1860 = vlaneseq
        %v1861 = vshrl.u32 %v1860, 7
        %v1862 = vsub.s32 1, %v1861
        %v1863 = vrot.slane %v1851, %v1862
        %1865 = vbcast.lane.b32.xlu0 %v1863, 256
        %v1866 = vpop.permute.xlu0 %1865
        %v1867 = vlaneseq
        %v1868 = vshrl.u32 %v1867, 7
        %v1869 = vsub.s32 2, %v1868
        %v1870 = vrot.slane %v1851, %v1869
        %1872 = vbcast.lane.b32.xlu0 %v1870, 256
        %v1873 = vpop.permute.xlu0 %1872
        %v1874 = vlaneseq
        %v1875 = vshrl.u32 %v1874, 7
        %v1876 = vsub.s32 3, %v1875
        %v1877 = vrot.slane %v1851, %v1876
        %1879 = vbcast.lane.b32.xlu0 %v1877, 256
        %v1880 = vpop.permute.xlu0 %1879
        %v1881 = vlaneseq
        %v1882 = vshrl.u32 %v1881, 7
        %v1883 = vsub.s32 4, %v1882
        %v1884 = vrot.slane %v1851, %v1883
        %1886 = vbcast.lane.b32.xlu0 %v1884, 256
        %v1887 = vpop.permute.xlu0 %1886
        %v1888 = vlaneseq
        %v1889 = vshrl.u32 %v1888, 7
        %v1890 = vsub.s32 5, %v1889
        %v1891 = vrot.slane %v1851, %v1890
        %1893 = vbcast.lane.b32.xlu0 %v1891, 256
        %v1894 = vpop.permute.xlu0 %1893
        %v1895 = vlaneseq
        %v1896 = vshrl.u32 %v1895, 7
        %v1897 = vsub.s32 6, %v1896
        %v1898 = vrot.slane %v1851, %v1897
        %1900 = vbcast.lane.b32.xlu0 %v1898, 256
        %v1901 = vpop.permute.xlu0 %1900
        %v1902 = vlaneseq
        %v1903 = vshrl.u32 %v1902, 7
        %v1904 = vsub.s32 7, %v1903
        %v1905 = vrot.slane %v1851, %v1904
        %1907 = vbcast.lane.b32.xlu0 %v1905, 256
        %v1908 = vpop.permute.xlu0 %1907
        %v1909 = vmul.f32 %v1859, %v1228
        %v1910 = vmul.f32 %v1866, %v1231
        %v1911 = vmul.f32 %v1873, %v1236
        %v1912 = vmul.f32 %v1880, %v1239
        %v1913 = vmul.f32 %v1887, %v1244
        %v1914 = vmul.f32 %v1894, %v1247
        %v1915 = vmul.f32 %v1901, %v1252
        %v1916 = vmul.f32 %v1908, %v1255
        %vm1917 = vcmask 261248
        %v1918 = vsel %vm1917, %v1909, 0.0
        %v1919 = vrot.slane %v1918, 4
        %v1920 = vadd.f32 %v1918, %v1919
        %v1921 = vrot.slane %v1920, 2
        %v1922 = vadd.f32 %v1920, %v1921
        %v1923 = vrot.slane %v1922, 1
        %v1924 = vadd.f32 %v1922, %v1923
        %v1925 = vsel %vm1917, %v1910, 0.0
        %v1926 = vrot.slane %v1925, 4
        %v1927 = vadd.f32 %v1925, %v1926
        %v1928 = vrot.slane %v1927, 2
        %v1929 = vadd.f32 %v1927, %v1928
        %v1930 = vrot.slane %v1929, 1
        %v1931 = vadd.f32 %v1929, %v1930
        %v1932 = vsel %vm1917, %v1911, 0.0
        %v1933 = vrot.slane %v1932, 4
        %v1934 = vadd.f32 %v1932, %v1933
        %v1935 = vrot.slane %v1934, 2
        %v1936 = vadd.f32 %v1934, %v1935
        %v1937 = vrot.slane %v1936, 1
        %v1938 = vadd.f32 %v1936, %v1937
        %v1939 = vsel %vm1917, %v1912, 0.0
        %v1940 = vrot.slane %v1939, 4
        %v1941 = vadd.f32 %v1939, %v1940
        %v1942 = vrot.slane %v1941, 2
        %v1943 = vadd.f32 %v1941, %v1942
        %v1944 = vrot.slane %v1943, 1
        %v1945 = vadd.f32 %v1943, %v1944
        %v1946 = vsel %vm1917, %v1913, 0.0
        %v1947 = vrot.slane %v1946, 4
        %v1948 = vadd.f32 %v1946, %v1947
        %v1949 = vrot.slane %v1948, 2
        %v1950 = vadd.f32 %v1948, %v1949
        %v1951 = vrot.slane %v1950, 1
        %v1952 = vadd.f32 %v1950, %v1951
        %v1953 = vsel %vm1917, %v1914, 0.0
        %v1954 = vrot.slane %v1953, 4
        %v1955 = vadd.f32 %v1953, %v1954
        %v1956 = vrot.slane %v1955, 2
        %v1957 = vadd.f32 %v1955, %v1956
        %v1958 = vrot.slane %v1957, 1
        %v1959 = vadd.f32 %v1957, %v1958
        %v1960 = vsel %vm1917, %v1915, 0.0
        %v1961 = vrot.slane %v1960, 4
        %v1962 = vadd.f32 %v1960, %v1961
        %v1963 = vrot.slane %v1962, 2
        %v1964 = vadd.f32 %v1962, %v1963
        %v1965 = vrot.slane %v1964, 1
        %v1966 = vadd.f32 %v1964, %v1965
        %v1967 = vsel %vm1917, %v1916, 0.0
        %v1968 = vrot.slane %v1967, 4
        %v1969 = vadd.f32 %v1967, %v1968
        %v1970 = vrot.slane %v1969, 2
        %v1971 = vadd.f32 %v1969, %v1970
        %v1972 = vrot.slane %v1971, 1
        %v1973 = vadd.f32 %v1971, %v1972
        %1975 = vrot.lane.b32.xlu0 %v1260, 112
        %v1976 = vpop.permute.xlu0 %1975
        %v1985 = vsel %vm1424, %v1931, %v1924
        %v1986 = vsel %vm1426, %v1938, %v1985
        %v1987 = vsel %vm1428, %v1945, %v1986
        %v1988 = vsel %vm1430, %v1952, %v1987
        %v1989 = vsel %vm1432, %v1959, %v1988
        %v1990 = vsel %vm1434, %v1966, %v1989
        %v1991 = vsel %vm1436, %v1973, %v1990
        %1992 = vrot.lane.b32.xlu0 %v1991, 112
        %v1993 = vpop.permute.xlu0 %1992
        %v1996 = vsel %vm1487, %v1852, 0
        %v1999 = vsel %vm1109, %v1976, 0
        %2001 = vmatprep.subr.bf16.mxu0 0
        %2002 = vmatpush1.bf16.msra.mxu0 0
        %2003 = vmatprep.subr.bf16.mxu0 0
        %2004 = vmatpush1.bf16.msra.mxu0 0
        %2005 = vmatprep.subr.bf16.mxu0 0
        %2006 = vmatpush1.bf16.msra.mxu0 0
        %2007 = vmatprep.subr.bf16.mxu0 0
        %2008 = vmatpush1.bf16.msra.mxu0 0
        %2009 = vmatprep.subr.bf16.mxu0 0
        %2010 = vmatpush1.bf16.msra.mxu0 0
        %2011 = vmatprep.subr.bf16.mxu0 0
        %2012 = vmatpush1.bf16.msra.mxu0 0
        %2013 = vmatprep.subr.bf16.mxu0 0
        %2014 = vmatpush1.bf16.msra.mxu0 0
        %2015 = vmatprep.subr.bf16.mxu0 0
        %2016 = vmatpush1.bf16.msra.mxu0 %v1999
        %2017 = vmatprep.subr.bf16.mxu0 0
        %2018 = vmatpush2.bf16.msra.mxu0 0
        %2019 = vmatprep.subr.bf16.mxu0 0
        %2020 = vmatpush2.bf16.msra.mxu0 0
        %2021 = vmatprep.subr.bf16.mxu0 0
        %2022 = vmatpush2.bf16.msra.mxu0 0
        %2023 = vmatprep.subr.bf16.mxu0 0
        %2024 = vmatpush2.bf16.msra.mxu0 0
        %2025 = vmatprep.subr.bf16.mxu0 0
        %2026 = vmatpush2.bf16.msra.mxu0 0
        %2027 = vmatprep.subr.bf16.mxu0 0
        %2028 = vmatpush2.bf16.msra.mxu0 0
        %2029 = vmatprep.subr.bf16.mxu0 0
        %2030 = vmatpush2.bf16.msra.mxu0 0
        %2031 = vmatprep.subr.bf16.mxu0 0
        %2032 = vmatpush2.bf16.msra.mxu0 0
        %2033 = vmatprep.mubr.bf16.mxu0 0
        %2034 = vmatmul.mubr.bf16.gmra.mxu0 %v1996
        %v2035 = vpop.f32.mrf.mxu0
        %v2036 = vadd.f32 %v1993, %v2035
        %v2037 = vpop.f32.mrf.mxu0
        %v2038 = vpop.f32.mrf.mxu0
        %v2039 = vpop.f32.mrf.mxu0
        %2040 = vdwg.mxu0
        %2042 = vrot.lane.b32.xlu0 %v2036, 16
        %v2043 = vpop.permute.xlu0 %2042
        %2045 = vst.msk [vmem:[#allocation2] sm:$0xff] %vm1917, %v2043
        %v2046 = vld [vmem:[#allocation2] sm:$0xff]
        %v2047 = vadd.f32 %v788, %v2046
        %v2048 = vld [vmem:[%s11] sm:$0x1]
        %v2049 = vld [vmem:[%s12] sm:$0x1]
        %v2050 = vsel %vm760, %v2047, 0.0
        %2051 = vadd.xlane.f32.xlu0 %v2050
        %v2052 = vpop.xlane.xlu0 %2051
        %v2053 = vmul.f32 %v2052, %v764
        %v2054 = vsub.f32 %v2047, %v2053
        %v2055 = vmul.f32 %v2054, %v2054
        %v2056 = vsel %vm760, %v2055, 0.0
        %2057 = vadd.xlane.f32.xlu0 %v2056
        %v2058 = vpop.xlane.xlu0 %2057
        %v2059 = vmul.f32 %v2058, %v764
        %v2060 = vadd.f32 %v2059, 1e-08
        %v2061 = vrsqrt.pop %v2060
        %v2062 = vmul.f32 %v2054, %v2061
        %v2064 = vlaneseq
        %v2065 = vshrl.u32 %v2064, 7
        %v2066 = vsub.s32 0, %v2065
        %v2067 = vrot.slane %v2048, %v2066
        %v2069 = vmul.f32 %v2062, %v2067
        %v2071 = vlaneseq
        %v2072 = vshrl.u32 %v2071, 7
        %v2073 = vsub.s32 0, %v2072
        %v2074 = vrot.slane %v2049, %v2073
        %v2076 = vadd.f32 %v2069, %v2074
        %v2077 = vpack.c.bf16 %v2076, %v2076
        %v2078 = vld [vmem:[#allocation15] sm:$0xf]
        %v2079 = vld [vmem:[#allocation15 + $0x4] sm:$0xf]
        %v2080 = vld [vmem:[#allocation15 + $0x8] sm:$0xf]
        %v2081 = vld [vmem:[#allocation15 + $0xc] sm:$0xf]
        %v2082 = vld [vmem:[%s14] sm:$0x1]
        %v2084 = vlaneseq
        %v2085 = vshrl.u32 %v2084, 7
        %v2086 = vsub.s32 0, %v2085
        %v2087 = vrot.slane %v2082, %v2086
        %v2093 = vunpack.c.l.b16 %v2078
        %v2094 = vunpack.c.l.b16 %v2079
        %v2095 = vunpack.c.l.b16 %v2080
        %v2096 = vunpack.c.l.b16 %v2081
        %v2097 = vpack.c.b16 %v2094, %v2093
        %v2098 = vpack.c.b16 %v2096, %v2095
        %v2102 = vsel %vm760, %v2077, 0
        %2104 = vmatprep.subr.bf16.mxu0 0
        %2105 = vmatpush1.bf16.msra.mxu0 0
        %2106 = vmatprep.subr.bf16.mxu0 0
        %2107 = vmatpush1.bf16.msra.mxu0 0
        %2108 = vmatprep.subr.bf16.mxu0 0
        %2109 = vmatpush1.bf16.msra.mxu0 0
        %2110 = vmatprep.subr.bf16.mxu0 0
        %2111 = vmatpush1.bf16.msra.mxu0 0
        %2112 = vmatprep.subr.bf16.mxu0 0
        %2113 = vmatpush1.bf16.msra.mxu0 0
        %2114 = vmatprep.subr.bf16.mxu0 0
        %2115 = vmatpush1.bf16.msra.mxu0 0
        %2116 = vmatprep.subr.bf16.mxu0 0
        %2117 = vmatpush1.bf16.msra.mxu0 %v2098
        %2118 = vmatprep.subr.bf16.mxu0 0
        %2119 = vmatpush1.bf16.msra.mxu0 %v2097
        %2120 = vmatprep.subr.bf16.mxu0 0
        %2121 = vmatpush2.bf16.msra.mxu0 0
        %2122 = vmatprep.subr.bf16.mxu0 0
        %2123 = vmatpush2.bf16.msra.mxu0 0
        %2124 = vmatprep.subr.bf16.mxu0 0
        %2125 = vmatpush2.bf16.msra.mxu0 0
        %2126 = vmatprep.subr.bf16.mxu0 0
        %2127 = vmatpush2.bf16.msra.mxu0 0
        %2128 = vmatprep.subr.bf16.mxu0 0
        %2129 = vmatpush2.bf16.msra.mxu0 0
        %2130 = vmatprep.subr.bf16.mxu0 0
        %2131 = vmatpush2.bf16.msra.mxu0 0
        %2132 = vmatprep.subr.bf16.mxu0 0
        %2133 = vmatpush2.bf16.msra.mxu0 0
        %2134 = vmatprep.subr.bf16.mxu0 0
        %2135 = vmatpush2.bf16.msra.mxu0 0
        %2136 = vmatprep.mubr.bf16.mxu0 0
        %2137 = vmatmul.mubr.bf16.gmra.mxu0 %v2102
        %v2138 = vpop.f32.mrf.mxu0
        %v2139 = vadd.f32 %v2087, %v2138
        %v2140 = vpop.f32.mrf.mxu0
        %v2141 = vpop.f32.mrf.mxu0
        %v2142 = vpop.f32.mrf.mxu0
        %2143 = vdwg.mxu0
        %v2144 = vmax.f32 %v2139, 0.0
        %v2145 = vpack.c.bf16 %v2144, %v2144
        %v2146 = vld [vmem:[#allocation17] sm:$0xf]
        %v2147 = vld [vmem:[#allocation17 + $0x4] sm:$0xf]
        %v2148 = vld [vmem:[#allocation17 + $0x8] sm:$0xf]
        %v2149 = vld [vmem:[#allocation17 + $0xc] sm:$0xf]
        %v2150 = vld [vmem:[%s16] sm:$0x1]
        %v2152 = vlaneseq
        %v2153 = vshrl.u32 %v2152, 7
        %v2154 = vsub.s32 0, %v2153
        %v2155 = vrot.slane %v2150, %v2154
        %v2161 = vunpack.c.l.b16 %v2146
        %v2162 = vunpack.c.l.b16 %v2147
        %v2163 = vunpack.c.l.b16 %v2148
        %v2164 = vunpack.c.l.b16 %v2149
        %v2165 = vpack.c.b16 %v2162, %v2161
        %v2166 = vpack.c.b16 %v2164, %v2163
        %v2170 = vsel %vm760, %v2145, 0
        %2172 = vmatprep.subr.bf16.mxu0 0
        %2173 = vmatpush1.bf16.msra.mxu0 0
        %2174 = vmatprep.subr.bf16.mxu0 0
        %2175 = vmatpush1.bf16.msra.mxu0 0
        %2176 = vmatprep.subr.bf16.mxu0 0
        %2177 = vmatpush1.bf16.msra.mxu0 0
        %2178 = vmatprep.subr.bf16.mxu0 0
        %2179 = vmatpush1.bf16.msra.mxu0 0
        %2180 = vmatprep.subr.bf16.mxu0 0
        %2181 = vmatpush1.bf16.msra.mxu0 0
        %2182 = vmatprep.subr.bf16.mxu0 0
        %2183 = vmatpush1.bf16.msra.mxu0 0
        %2184 = vmatprep.subr.bf16.mxu0 0
        %2185 = vmatpush1.bf16.msra.mxu0 %v2166
        %2186 = vmatprep.subr.bf16.mxu0 0
        %2187 = vmatpush1.bf16.msra.mxu0 %v2165
        %2188 = vmatprep.subr.bf16.mxu0 0
        %2189 = vmatpush2.bf16.msra.mxu0 0
        %2190 = vmatprep.subr.bf16.mxu0 0
        %2191 = vmatpush2.bf16.msra.mxu0 0
        %2192 = vmatprep.subr.bf16.mxu0 0
        %2193 = vmatpush2.bf16.msra.mxu0 0
        %2194 = vmatprep.subr.bf16.mxu0 0
        %2195 = vmatpush2.bf16.msra.mxu0 0
        %2196 = vmatprep.subr.bf16.mxu0 0
        %2197 = vmatpush2.bf16.msra.mxu0 0
        %2198 = vmatprep.subr.bf16.mxu0 0
        %2199 = vmatpush2.bf16.msra.mxu0 0
        %2200 = vmatprep.subr.bf16.mxu0 0
        %2201 = vmatpush2.bf16.msra.mxu0 0
        %2202 = vmatprep.subr.bf16.mxu0 0
        %2203 = vmatpush2.bf16.msra.mxu0 0
        %2204 = vmatprep.mubr.bf16.mxu0 0
        %2205 = vmatmul.mubr.bf16.gmra.mxu0 %v2170
        %v2206 = vpop.f32.mrf.mxu0
        %v2207 = vadd.f32 %v2155, %v2206
        %v2208 = vpop.f32.mrf.mxu0
        %v2209 = vpop.f32.mrf.mxu0
        %v2210 = vpop.f32.mrf.mxu0
        %2211 = vdwg.mxu0
        %v2212 = vadd.f32 %v2207, %v2076
        %v2213 = vsub.f32 1.0, %v963
        %2215 = vset.pattern.permute.xlu0 0
        %2216 = vperm.xlu0 %2215, %v2213
        %v2217 = vpop.permute.xlu0 %2216
        %v2219 = vmul.f32 %v2212, %v2217
        %2220 = vst.msk [vmem:[%s743] sm:$0xff] %vm760, %v2219
        %s2221 = sand.u32 %s425, 1
        %s2222 = scalar_lea.sflag [#allocation5], %s2221
        %s2223 = sand.u32 %s425, 1
        %s2224 = smul.addr %s2223, 8
        %s2225 = scalar_lea.vmem [#allocation18], %s2224
        // Predicated region
        $region129: #{tpu_custom_call.1} parent=87 // pred_check
          %p2226 = pneg %p435
        $region130: #{tpu_custom_call.1} parent=87 // pred_check_branch
          %2228 = sbr.rel (%p2226) target = $region132
        $region131: #{tpu_custom_call.1} parent=87 // pred_region
          %s2230 = ssub.s32 128, 128
          %2231 = vsyncadd %s2222, %s2230
          %s2232 = smul.addr %s35, 128
          %s2233 = scalar_lea.hbm %s17, %s2232
          %s2235 = sshll.u32 %s2225, 4
          %s2236 = int_to_ptr.vmem [resolvable:$true] %s2235
          %2238 = dma.vmem_to_hbm [thread:$0]  %s2236, 128, %s2233, %s2222
        $region132: #{tpu_custom_call.1} parent=87 // pred_fallthru
          _
      $region88: #{tpu_custom_call.1} parent=5 // pred_fallthru
        _
      %p2239 = scmp.le.s32.totalorder 2, %s30
      // Predicated region
      $region133: #{tpu_custom_call.1} parent=5 // pred_check
        %p2240 = pneg %p2239
      $region134: #{tpu_custom_call.1} parent=5 // pred_check_branch
        %2242 = sbr.rel (%p2240) target = $region136
      $region135: #{tpu_custom_call.1} parent=5 // pred_region
        %s2243 = ssub.s32 %s30, 2
        // Predicated region
        $region137: #{tpu_custom_call.1} parent=135 // pred_check
          %p2244 = pneg %p441
        $region138: #{tpu_custom_call.1} parent=135 // pred_check_branch
          %2246 = sbr.rel (%p2244) target = $region140
        $region139: #{tpu_custom_call.1} parent=135 // pred_region
          %s2247 = sand.u32 %s426, 1
          %s2248 = scalar_lea.sflag [#allocation5], %s2247
          %s2249 = sand.u32 %s426, 1
          %s2250 = smul.addr %s2249, 8
          %s2251 = scalar_lea.vmem [#allocation18], %s2250
          %2252 = dma.done %s2248, 128
        $region140: #{tpu_custom_call.1} parent=135 // pred_fallthru
          _
      $region136: #{tpu_custom_call.1} parent=5 // pred_fallthru
        _
    $region6: #{tpu_custom_call.1} parent=1 // loop_footer
      %s34 = sadd.s32 1, %s30
    $region7: #{tpu_custom_call.1} parent=1 // loop_footer_branch
      %29 = sbr.rel target = $region3
    $region8: #{tpu_custom_call.1} parent=1 // loop_exit
      _
    %2253 = vsyncpa [#allocation4], 1
    %s2254 = scalar_lea.sflag [#allocation4], 1
    %2255 = vsyncpa %s2254, 1
    %2256 = vsyncpa [#allocation7], 1
    %2257 = vsyncpa [#allocation10], 1
    %2258 = vsyncpa [#allocation16], 1
    %2259 = vsyncpa [#allocation5], 1
    %s2260 = scalar_lea.sflag [#allocation5], 1
    %2261 = vsyncpa %s2260, 1

</llo_original>
